<compile_context>
chip_gen: v6e
topology: v6e:2x2x1
jax: 0.10.0
libtpu: 0.0.40
codegen_flags: <defaults>
</compile_context>

<pallas_src>
import jax
import jax.numpy as jnp
from jax.experimental import pallas as pl
from jax.experimental.pallas import tpu as pltpu


# Leave headroom under v7x's 64 MiB physical VMEM; v5e/v6e have 128 MiB.
_VMEM_LIMIT_BYTES = 48 * 1024 * 1024


def _round_up(x, m):
    return ((x + m - 1) // m) * m


def _choose_tm(M, tm):
    """Clamp the row tile; give the parallel row axis >=2 tiles (v7x has 2 TCs)."""
    tm = max(8, min(tm, _round_up(M, 8)))
    if M > 128 and _round_up(M, tm) // tm < 2:
        tm = 128
    return tm


# ----------------------------------------------------------------------------
# Kernel bodies
# ----------------------------------------------------------------------------
def _linear_relu_kernel(x_ref, w_ref, b_ref, o_ref):
    # y = relu(x @ W + b); activation cast to bf16 IN-KERNEL, bf16 weights,
    # f32 MXU accumulation, f32 bias+ReLU epilogue.
    x = x_ref[...].astype(jnp.bfloat16)
    y = jnp.dot(x, w_ref[...], preferred_element_type=jnp.float32)
    y = y + b_ref[...]
    o_ref[...] = jnp.maximum(y, 0.0).astype(o_ref.dtype)


def _spatial_linear_kernel(sub_ref, obj_ref, w_ref, b_ref, o_ref):
    # sub_ref / obj_ref: [tm, 5] roi rows (batch, x1, y1, x2, y2), f32.
    sub = sub_ref[...]
    obj = obj_ref[...]

    # Union box (matches torch.min/max over cat([sub, obj], 1)[:, k::5]).
    u1 = jnp.minimum(sub[:, 1:2], obj[:, 1:2])   # min x1
    u2 = jnp.minimum(sub[:, 2:3], obj[:, 2:3])   # min y1
    u3 = jnp.maximum(sub[:, 3:4], obj[:, 3:4])   # max x2
    u4 = jnp.maximum(sub[:, 4:5], obj[:, 4:5])   # max y2

    # Exact reciprocals (spatial path is tiny now that the contraction is MXU).
    inv_dx = pl.reciprocal(u3 - u1)
    inv_dy = pl.reciprocal(u4 - u2)

    feat = jnp.concatenate([
        (sub[:, 1:2] - u1) * inv_dx,
        (sub[:, 2:3] - u2) * inv_dy,
        (sub[:, 3:4] - u3) * inv_dx,
        (sub[:, 4:5] - u4) * inv_dy,
        (obj[:, 1:2] - u1) * inv_dx,
        (obj[:, 2:3] - u2) * inv_dy,
        (obj[:, 3:4] - u3) * inv_dx,
        (obj[:, 4:5] - u4) * inv_dy,
    ], axis=1)                                   # [tm, 8]

    # Single K=8 MXU dot (one K pass) instead of 8 rank-1 VPU/vst updates.
    y = jnp.dot(feat.astype(jnp.bfloat16), w_ref[...],
                preferred_element_type=jnp.float32)
    y = y + b_ref[...]
    o_ref[...] = jnp.maximum(y, 0.0).astype(o_ref.dtype)


# ----------------------------------------------------------------------------
# Pallas wrappers
# ----------------------------------------------------------------------------
def linear_relu(x, w, b, *, tm=512, out_dtype=jnp.float32):
    """relu(x @ w + b). w is expected to be pre-cast bf16; x is cast in-kernel."""
    M, K = x.shape
    Kw, N = w.shape
    assert K == Kw
    tm = _choose_tm(M, tm)
    Mp = _round_up(M, tm)
    if Mp != M:
        x = jnp.pad(x, ((0, Mp - M), (0, 0)))
    b2 = b.reshape(1, N).astype(jnp.float32)
    cost = pl.CostEstimate(
        flops=2 * Mp * K * N,
        transcendentals=0,
        bytes_accessed=(Mp * K * x.dtype.itemsize + K * N * w.dtype.itemsize
                        + N * 4 + Mp * N * jnp.dtype(out_dtype).itemsize))
    out = pl.pallas_call(
        _linear_relu_kernel,
        out_shape=jax.ShapeDtypeStruct((Mp, N), out_dtype),
        grid=(Mp // tm,),
        in_specs=[
            pl.BlockSpec((tm, K), lambda i: (i, 0)),
            # Constant index maps -> block is resident across the row grid;
            # single-buffer to reclaim VMEM (matters on v7x's 64 MiB).
            pl.BlockSpec((K, N), lambda i: (0, 0), pipeline_mode=pl.Buffered(1)),
            pl.BlockSpec((1, N), lambda i: (0, 0), pipeline_mode=pl.Buffered(1)),
        ],
        out_specs=pl.BlockSpec((tm, N), lambda i: (i, 0)),
        compiler_params=pltpu.CompilerParams(
            dimension_semantics=("parallel",),
            vmem_limit_bytes=_VMEM_LIMIT_BYTES),
        cost_estimate=cost,
    )(x, w, b2)
    return out[:M] if Mp != M else out


def batched_linear_relu(x, w, b, *, tm=256, out_dtype=jnp.float32):
    """relu(x[i] @ w[i] + b[i]) per batch entry, in a single pallas_call.

    x: [B, M, K] (bf16 or f32), w: [B, K, N] bf16, b: [B, N] -> [B, M, N]
    """
    B, M, K = x.shape
    Bw, Kw, N = w.shape
    assert B == Bw and K == Kw
    tm = _choose_tm(M, tm)
    Mp = _round_up(M, tm)
    if Mp != M:
        x = jnp.pad(x, ((0, 0), (0, Mp - M), (0, 0)))
    b3 = b.reshape(B, 1, N).astype(jnp.float32)
    cost = pl.CostEstimate(
        flops=2 * B * Mp * K * N,
        transcendentals=0,
        bytes_accessed=B * (Mp * K * x.dtype.itemsize + K * N * w.dtype.itemsize
                            + N * 4 + Mp * N * jnp.dtype(out_dtype).itemsize))
    out = pl.pallas_call(
        _linear_relu_kernel,
        out_shape=jax.ShapeDtypeStruct((B, Mp, N), out_dtype),
        grid=(B, Mp // tm),
        in_specs=[
            pl.BlockSpec((None, tm, K), lambda bb, i: (bb, i, 0)),
            # Weight changes only at batch boundaries; keep default buffering so
            # the next batch's (small bf16) weight can prefetch.
            pl.BlockSpec((None, K, N), lambda bb, i: (bb, 0, 0)),
            pl.BlockSpec((None, 1, N), lambda bb, i: (bb, 0, 0)),
        ],
        out_specs=pl.BlockSpec((None, tm, N), lambda bb, i: (bb, i, 0)),
        compiler_params=pltpu.CompilerParams(
            dimension_semantics=("parallel", "parallel"),
            vmem_limit_bytes=_VMEM_LIMIT_BYTES),
        cost_estimate=cost,
    )(x, w, b3)
    return out[:, :M] if Mp != M else out


def spatial_linear(sub_bbox, obj_bbox, w, b, *, tm=256, out_dtype=jnp.float32):
    """Fused relative-spatial-feature extraction + linear_sp (relu(feat@w+b))."""
    P = sub_bbox.shape[0]
    N = w.shape[1]
    tm = _choose_tm(P, tm)
    Pp = _round_up(P, tm)
    sub_bbox = sub_bbox.astype(jnp.float32)
    obj_bbox = obj_bbox.astype(jnp.float32)
    if Pp != P:
        # Pad with a unit box so padded rows stay finite (no 0/0 -> NaN);
        # they are sliced off below anyway.
        unit = jnp.tile(jnp.asarray([[0., 0., 0., 1., 1.]], jnp.float32),
                        (Pp - P, 1))
        sub_bbox = jnp.concatenate([sub_bbox, unit], axis=0)
        obj_bbox = jnp.concatenate([obj_bbox, unit], axis=0)
    b2 = b.reshape(1, N).astype(jnp.float32)
    out = pl.pallas_call(
        _spatial_linear_kernel,
        out_shape=jax.ShapeDtypeStruct((Pp, N), out_dtype),
        grid=(Pp // tm,),
        in_specs=[
            pl.BlockSpec((tm, 5), lambda i: (i, 0)),
            pl.BlockSpec((tm, 5), lambda i: (i, 0)),
            pl.BlockSpec((8, N), lambda i: (0, 0), pipeline_mode=pl.Buffered(1)),
            pl.BlockSpec((1, N), lambda i: (0, 0), pipeline_mode=pl.Buffered(1)),
        ],
        out_specs=pl.BlockSpec((tm, N), lambda i: (i, 0)),
        compiler_params=pltpu.CompilerParams(
            dimension_semantics=("parallel",),
            vmem_limit_bytes=_VMEM_LIMIT_BYTES),
    )(sub_bbox, obj_bbox, w, b2)
    return out[:P] if Pp != P else out


# ----------------------------------------------------------------------------
# Module equivalent
# ----------------------------------------------------------------------------
def init_params(key, num_class, in_size, out_size):
    ks = jax.random.split(key, 16)

    def fc(kw, kb, fan_in, fan_out):
        w = jax.random.normal(kw, (fan_in, fan_out), jnp.float32) * 0.02
        b = jax.random.normal(kb, (fan_out,), jnp.float32) * 0.01
        return w, b

    params = {
        "vs": fc(ks[0], ks[1], in_size, out_size),
        "vo": fc(ks[2], ks[3], in_size, out_size),
        "sp": fc(ks[4], ks[5], 8, out_size),
        "es": fc(ks[6], ks[7], 300, out_size),
        "eo": fc(ks[8], ks[9], 300, out_size),
        "in": fc(ks[10], ks[11], 70, out_size),
        # synthetic stand-ins for ./process/object_w2v.npy and vrd_internal.npz
        "external_lan": jax.random.normal(ks[12], (num_class, 300), jnp.float32),
        "sub_obj_pred": jax.random.uniform(ks[13], (num_class, num_class, 70),
                                           jnp.float32),
    }
    return params


def prepare_fused_params(params):
    """One-time (outside jit) weight fusion + bf16 pre-cast.

    - vs|vo concatenated along N -> one matmul reading fc7 once, lane-dense out.
    - es/eo stacked on a batch axis (same K=300) -> one batched call.
    - linear_in kept separate (K=70): no wasteful 70->300 zero pad.
    - all matmul weights and embedding tables pre-cast to bf16 so no per-call
      HBM cast passes remain in the jit'd forward; biases stay f32.
    """
    w_vs, b_vs = params["vs"]
    w_vo, b_vo = params["vo"]
    w_es, b_es = params["es"]
    w_eo, b_eo = params["eo"]
    w_in, b_in = params["in"]
    w_sp, b_sp = params["sp"]
    fused = {
        "vsvo_w": jnp.concatenate([w_vs, w_vo], axis=1).astype(jnp.bfloat16),
        "vsvo_b": jnp.concatenate([b_vs, b_vo], axis=0).astype(jnp.float32),
        "lang_w": jnp.stack([w_es, w_eo], axis=0).astype(jnp.bfloat16),  # [2,300,out]
        "lang_b": jnp.stack([b_es, b_eo], axis=0).astype(jnp.float32),   # [2,out]
        "in_w": w_in.astype(jnp.bfloat16),
        "in_b": b_in.astype(jnp.float32),
        "sp_w": w_sp.astype(jnp.bfloat16),
        "sp_b": b_sp.astype(jnp.float32),
        # bf16 tables: halves the gather/stack traffic; kernels consume bf16.
        "external_lan": params["external_lan"].astype(jnp.bfloat16),
        "sub_obj_pred": params["sub_obj_pred"].astype(jnp.bfloat16),
    }
    return fused


@jax.jit
def extract_rela_feature(params, fc7, rois, sub_cls, sub_inds, obj_cls, obj_inds):
    out_size = params["sp_w"].shape[1]

    # Fused linear_vs|linear_vo: fc7 streamed from HBM once, lane-dense [M, 2*out].
    vsvo = linear_relu(fc7, params["vsvo_w"], params["vsvo_b"], tm=512)
    # Column slice fused into the row gather (no [P, 2*out] intermediate).
    sub_fc = vsvo[sub_inds, :out_size]
    obj_fc = vsvo[obj_inds, out_size:]

    sub_bbox = rois[sub_inds]
    obj_bbox = rois[obj_inds]

    # Spatial feature + linear_sp (fused Pallas kernel, K=8 MXU dot).
    spatial_features = spatial_linear(sub_bbox, obj_bbox,
                                      params["sp_w"], params["sp_b"])

    # Language features: gathers in plain JAX (bf16 tables), es/eo in ONE batched
    # kernel, linear_in as its own K=70 kernel (no zero padding).
    sub_labels = sub_cls - 1
    obj_labels = obj_cls - 1
    external = params["external_lan"]
    lang_x = jnp.stack([external[sub_labels], external[obj_labels]], axis=0)  # [2,P,300] bf16
    lang_y = batched_linear_relu(lang_x, params["lang_w"], params["lang_b"])
    exter_sub, exter_obj = lang_y[0], lang_y[1]

    internal_so = params["sub_obj_pred"][sub_labels, obj_labels]              # [P,70] bf16
    inter_so = linear_relu(internal_so, params["in_w"], params["in_b"])

    return sub_fc, obj_fc, spatial_features, exter_sub, exter_obj, inter_so


# ----------------------------------------------------------------------------
# Pure-JAX reference (f32, exact divisions) for a correctness check
# ----------------------------------------------------------------------------
def _reference(params, fc7, rois, sub_cls, sub_inds, obj_cls, obj_inds):
    def fc(x, w, b):
        return jnp.maximum(x @ w + b, 0.0)

    sub_fc = fc(fc7, *params["vs"])[sub_inds]
    obj_fc = fc(fc7, *params["vo"])[obj_inds]
    sb, ob = rois[sub_inds], rois[obj_inds]
    u1 = jnp.minimum(sb[:, 1:2], ob[:, 1:2])
    u2 = jnp.minimum(sb[:, 2:3], ob[:, 2:3])
    u3 = jnp.maximum(sb[:, 3:4], ob[:, 3:4])
    u4 = jnp.maximum(sb[:, 4:5], ob[:, 4:5])
    dx, dy = u3 - u1, u4 - u2
    feat = jnp.concatenate([
        (sb[:, 1:2] - u1) / dx, (sb[:, 2:3] - u2) / dy,
        (sb[:, 3:4] - u3) / dx, (sb[:, 4:5] - u4) / dy,
        (ob[:, 1:2] - u1) / dx, (ob[:, 2:3] - u2) / dy,
        (ob[:, 3:4] - u3) / dx, (ob[:, 4:5] - u4) / dy], axis=1)
    spatial = fc(feat, *params["sp"])
    sl, ol = sub_cls - 1, obj_cls - 1
    es = fc(params["external_lan"][sl], *params["es"])
    eo = fc(params["external_lan"][ol], *params["eo"])
    iso = fc(params["sub_obj_pred"][sl, ol].astype(jnp.float32), *params["in"])
    return sub_fc, obj_fc, spatial, es, eo, iso


# ----------------------------------------------------------------------------
# Demo
# ----------------------------------------------------------------------------
if __name__ == "__main__":
    NUM_CLASS = 10
    IN_SIZE = 256      # small stand-in for 4096
    OUT_SIZE = 128     # small stand-in for 512
    N_ROIS = 16
    N_PAIRS = 8

    key = jax.random.PRNGKey(0)
    kp, k1, k2, k3, k4, k5, k6 = jax.random.split(key, 7)

    params = init_params(kp, NUM_CLASS, IN_SIZE, OUT_SIZE)
    params_fused = prepare_fused_params(params)

    fc7 = jax.random.normal(k1, (N_ROIS, IN_SIZE), jnp.float32)

    # rois: [batch_idx, x1, y1, x2, y2] with strictly positive widths/heights
    xy1 = jax.random.uniform(k2, (N_ROIS, 2), jnp.float32, 0.0, 50.0)
    wh = jax.random.uniform(k3, (N_ROIS, 2), jnp.float32, 10.0, 60.0)
    batch_idx = jnp.zeros((N_ROIS, 1), jnp.float32)
    rois = jnp.concatenate([batch_idx, xy1, xy1 + wh], axis=1)

    sub_cls = jax.random.randint(k4, (N_PAIRS,), 1, NUM_CLASS + 1, jnp.int32)
    obj_cls = jax.random.randint(k5, (N_PAIRS,), 1, NUM_CLASS + 1, jnp.int32)
    inds = jax.random.permutation(k6, N_ROIS)
    sub_inds = inds[:N_PAIRS].astype(jnp.int32)
    obj_inds = inds[N_PAIRS:2 * N_PAIRS].astype(jnp.int32)

    outs = extract_rela_feature(params_fused, fc7, rois, sub_cls, sub_inds,
                                obj_cls, obj_inds)
    outs = jax.block_until_ready(outs)

    refs = _reference(params, fc7, rois, sub_cls, sub_inds, obj_cls, obj_inds)

    expected_shapes = [(N_PAIRS, OUT_SIZE)] * 6
    for o, r, s in zip(outs, refs, expected_shapes):
        assert o.shape == s, (o.shape, s)
        assert bool(jnp.all(jnp.isfinite(o)))
        # bf16 MXU operands + bf16 embedding tables -> loose tolerance vs f32 ref.
        assert bool(jnp.allclose(o, r, rtol=3e-2, atol=3e-2)), \
            float(jnp.max(jnp.abs(o - r)))

    print("KERNEL_OK")
</pallas_src>

<mosaic_0001>
module attributes {stable_mosaic.version = 11 : i64} {
  func.func @_linear_relu_kernel(%arg0: i32, %arg1: i32, %arg2: memref<1x8x300xbf16, #tpu.memory_space<vmem>>, %arg3: memref<1x300x128xbf16, #tpu.memory_space<vmem>>, %arg4: memref<1x1x128xf32, #tpu.memory_space<vmem>>, %arg5: memref<1x8x128xf32, #tpu.memory_space<vmem>>) attributes {dimension_semantics = [#tpu.dimension_semantics<parallel>, #tpu.dimension_semantics<parallel>], iteration_bounds = array<i64: 2, 1>, scalar_prefetch = 0 : i64, scratch_operands = 0 : i64, tpu.core_type = #tpu.core_type<tc>, window_params = [{transform_indices = @transform_0, window_bounds = array<i64: 1, 8, 300>}, {transform_indices = @transform_1, window_bounds = array<i64: 1, 300, 128>}, {transform_indices = @transform_2, window_bounds = array<i64: 1, 1, 128>}, {transform_indices = @transform_3, window_bounds = array<i64: 1, 8, 128>}]} {
    %c0 = arith.constant 0 : index
    %c0_0 = arith.constant 0 : index
    %c0_1 = arith.constant 0 : index
    %0 = vector.load %arg2[%c0, %c0_0, %c0_1] : memref<1x8x300xbf16, #tpu.memory_space<vmem>>, vector<1x8x300xbf16>
    %1 = vector.shape_cast %0 : vector<1x8x300xbf16> to vector<8x300xbf16>
    %c0_2 = arith.constant 0 : index
    %c0_3 = arith.constant 0 : index
    %c0_4 = arith.constant 0 : index
    %2 = vector.load %arg3[%c0_2, %c0_3, %c0_4] : memref<1x300x128xbf16, #tpu.memory_space<vmem>>, vector<1x300x128xbf16>
    %3 = vector.shape_cast %2 : vector<1x300x128xbf16> to vector<300x128xbf16>
    %cst = arith.constant dense<0.000000e+00> : vector<8x128xf32>
    %4 = tpu.matmul %1, %3, %cst {dimension_numbers = #tpu.dot_dimension_numbers<[1], [0], [0], [1], [0, 0, 1, 1], [], []>} : vector<8x300xbf16>, vector<300x128xbf16>, vector<8x128xf32> -> vector<8x128xf32>
    %c0_5 = arith.constant 0 : index
    %c0_6 = arith.constant 0 : index
    %c0_7 = arith.constant 0 : index
    %5 = vector.load %arg4[%c0_5, %c0_6, %c0_7] : memref<1x1x128xf32, #tpu.memory_space<vmem>>, vector<1x1x128xf32>
    %6 = vector.shape_cast %5 : vector<1x1x128xf32> to vector<1x128xf32>
    %7 = vector.broadcast %6 : vector<1x128xf32> to vector<8x128xf32>
    %8 = arith.addf %4, %7 : vector<8x128xf32>
    %cst_8 = arith.constant 0.000000e+00 : f32
    %9 = vector.broadcast %cst_8 : f32 to vector<8x128xf32>
    %10 = arith.maximumf %8, %9 : vector<8x128xf32>
    %c0_9 = arith.constant 0 : index
    %c0_10 = arith.constant 0 : index
    %c0_11 = arith.constant 0 : index
    %11 = vector.load %arg5[%c0_9, %c0_10, %c0_11] : memref<1x8x128xf32, #tpu.memory_space<vmem>>, vector<1x8x128xf32>
    %12 = vector.shape_cast %11 : vector<1x8x128xf32> to vector<8x128xf32>
    %13 = vector.shape_cast %10 : vector<8x128xf32> to vector<1x8x128xf32>
    tpu.vector_store %arg5[%c0_9, %c0_10, %c0_11], %13 {strides = array<i32>} : memref<1x8x128xf32, #tpu.memory_space<vmem>>, vector<1x8x128xf32>,
    return
  }
  func.func @transform_0(%arg0: i32, %arg1: i32) -> (i32, i32, i32) {
    %c0_i32 = arith.constant 0 : i32
    %c0_i32_0 = arith.constant 0 : i32
    return %arg0, %arg1, %c0_i32 : i32, i32, i32
  }
  func.func @transform_1(%arg0: i32, %arg1: i32) -> (i32, i32, i32) {
    %c0_i32 = arith.constant 0 : i32
    %c0_i32_0 = arith.constant 0 : i32
    %c0_i32_1 = arith.constant 0 : i32
    return %arg0, %c0_i32, %c0_i32_0 : i32, i32, i32
  }
  func.func @transform_2(%arg0: i32, %arg1: i32) -> (i32, i32, i32) {
    %c0_i32 = arith.constant 0 : i32
    %c0_i32_0 = arith.constant 0 : i32
    %c0_i32_1 = arith.constant 0 : i32
    return %arg0, %c0_i32, %c0_i32_0 : i32, i32, i32
  }
  func.func @transform_3(%arg0: i32, %arg1: i32) -> (i32, i32, i32) {
    %c0_i32 = arith.constant 0 : i32
    %c0_i32_0 = arith.constant 0 : i32
    return %arg0, %arg1, %c0_i32 : i32, i32, i32
  }
}

module attributes {stable_mosaic.version = 11 : i64} {
  func.func @_linear_relu_kernel(%arg0: i32, %arg1: memref<16x256xf32, #tpu.memory_space<vmem>>, %arg2: memref<256x256xbf16, #tpu.memory_space<vmem>>, %arg3: memref<1x256xf32, #tpu.memory_space<vmem>>, %arg4: memref<16x256xf32, #tpu.memory_space<vmem>>) attributes {dimension_semantics = [#tpu.dimension_semantics<parallel>], iteration_bounds = array<i64: 1>, scalar_prefetch = 0 : i64, scratch_operands = 0 : i64, tpu.core_type = #tpu.core_type<tc>, window_params = [{transform_indices = @transform_0, window_bounds = array<i64: 16, 256>}, {pipeline_mode = #tpu.pipeline_mode<synchronous>, transform_indices = @transform_1, window_bounds = array<i64: 256, 256>}, {pipeline_mode = #tpu.pipeline_mode<synchronous>, transform_indices = @transform_2, window_bounds = array<i64: 1, 256>}, {transform_indices = @transform_3, window_bounds = array<i64: 16, 256>}]} {
    %c0 = arith.constant 0 : index
    %c0_0 = arith.constant 0 : index
    %0 = vector.load %arg1[%c0, %c0_0] : memref<16x256xf32, #tpu.memory_space<vmem>>, vector<16x256xf32>
    %1 = arith.truncf %0 : vector<16x256xf32> to vector<16x256xbf16>
    %c0_1 = arith.constant 0 : index
    %c0_2 = arith.constant 0 : index
    %2 = vector.load %arg2[%c0_1, %c0_2] : memref<256x256xbf16, #tpu.memory_space<vmem>>, vector<256x256xbf16>
    %cst = arith.constant dense<0.000000e+00> : vector<16x256xf32>
    %3 = tpu.matmul %1, %2, %cst {dimension_numbers = #tpu.dot_dimension_numbers<[1], [0], [0], [1], [0, 0, 1, 1], [], []>} : vector<16x256xbf16>, vector<256x256xbf16>, vector<16x256xf32> -> vector<16x256xf32>
    %c0_3 = arith.constant 0 : index
    %c0_4 = arith.constant 0 : index
    %4 = vector.load %arg3[%c0_3, %c0_4] : memref<1x256xf32, #tpu.memory_space<vmem>>, vector<1x256xf32>
    %5 = vector.broadcast %4 : vector<1x256xf32> to vector<16x256xf32>
    %6 = arith.addf %3, %5 : vector<16x256xf32>
    %cst_5 = arith.constant 0.000000e+00 : f32
    %7 = vector.broadcast %cst_5 : f32 to vector<16x256xf32>
    %8 = arith.maximumf %6, %7 : vector<16x256xf32>
    %c0_6 = arith.constant 0 : index
    %c0_7 = arith.constant 0 : index
    %9 = vector.load %arg4[%c0_6, %c0_7] : memref<16x256xf32, #tpu.memory_space<vmem>>, vector<16x256xf32>
    tpu.vector_store %arg4[%c0_6, %c0_7], %8 {strides = array<i32>} : memref<16x256xf32, #tpu.memory_space<vmem>>, vector<16x256xf32>,
    return
  }
  func.func @transform_0(%arg0: i32) -> (i32, i32) {
    %c0_i32 = arith.constant 0 : i32
    %c0_i32_0 = arith.constant 0 : i32
    return %arg0, %c0_i32 : i32, i32
  }
  func.func @transform_1(%arg0: i32) -> (i32, i32) {
    %c0_i32 = arith.constant 0 : i32
    %c0_i32_0 = arith.constant 0 : i32
    %c0_i32_1 = arith.constant 0 : i32
    return %c0_i32, %c0_i32_0 : i32, i32
  }
  func.func @transform_2(%arg0: i32) -> (i32, i32) {
    %c0_i32 = arith.constant 0 : i32
    %c0_i32_0 = arith.constant 0 : i32
    %c0_i32_1 = arith.constant 0 : i32
    return %c0_i32, %c0_i32_0 : i32, i32
  }
  func.func @transform_3(%arg0: i32) -> (i32, i32) {
    %c0_i32 = arith.constant 0 : i32
    %c0_i32_0 = arith.constant 0 : i32
    return %arg0, %c0_i32 : i32, i32
  }
}

module attributes {stable_mosaic.version = 11 : i64} {
  func.func @_spatial_linear_kernel(%arg0: i32, %arg1: memref<8x5xf32, #tpu.memory_space<vmem>>, %arg2: memref<8x5xf32, #tpu.memory_space<vmem>>, %arg3: memref<8x128xbf16, #tpu.memory_space<vmem>>, %arg4: memref<1x128xf32, #tpu.memory_space<vmem>>, %arg5: memref<8x128xf32, #tpu.memory_space<vmem>>) attributes {dimension_semantics = [#tpu.dimension_semantics<parallel>], iteration_bounds = array<i64: 1>, scalar_prefetch = 0 : i64, scratch_operands = 0 : i64, tpu.core_type = #tpu.core_type<tc>, window_params = [{transform_indices = @transform_0, window_bounds = array<i64: 8, 5>}, {transform_indices = @transform_1, window_bounds = array<i64: 8, 5>}, {pipeline_mode = #tpu.pipeline_mode<synchronous>, transform_indices = @transform_2, window_bounds = array<i64: 8, 128>}, {pipeline_mode = #tpu.pipeline_mode<synchronous>, transform_indices = @transform_3, window_bounds = array<i64: 1, 128>}, {transform_indices = @transform_4, window_bounds = array<i64: 8, 128>}]} {
    %c0 = arith.constant 0 : index
    %c0_0 = arith.constant 0 : index
    %0 = vector.load %arg1[%c0, %c0_0] : memref<8x5xf32, #tpu.memory_space<vmem>>, vector<8x5xf32>
    %c0_1 = arith.constant 0 : index
    %c0_2 = arith.constant 0 : index
    %1 = vector.load %arg2[%c0_1, %c0_2] : memref<8x5xf32, #tpu.memory_space<vmem>>, vector<8x5xf32>
    %2 = vector.extract_strided_slice %0 {offsets = [0, 1], sizes = [8, 1], strides = [1, 1]} : vector<8x5xf32> to vector<8x1xf32>
    %3 = vector.extract_strided_slice %1 {offsets = [0, 1], sizes = [8, 1], strides = [1, 1]} : vector<8x5xf32> to vector<8x1xf32>
    %4 = arith.minimumf %2, %3 : vector<8x1xf32>
    %5 = vector.extract_strided_slice %0 {offsets = [0, 2], sizes = [8, 1], strides = [1, 1]} : vector<8x5xf32> to vector<8x1xf32>
    %6 = vector.extract_strided_slice %1 {offsets = [0, 2], sizes = [8, 1], strides = [1, 1]} : vector<8x5xf32> to vector<8x1xf32>
    %7 = arith.minimumf %5, %6 : vector<8x1xf32>
    %8 = vector.extract_strided_slice %0 {offsets = [0, 3], sizes = [8, 1], strides = [1, 1]} : vector<8x5xf32> to vector<8x1xf32>
    %9 = vector.extract_strided_slice %1 {offsets = [0, 3], sizes = [8, 1], strides = [1, 1]} : vector<8x5xf32> to vector<8x1xf32>
    %10 = arith.maximumf %8, %9 : vector<8x1xf32>
    %11 = vector.extract_strided_slice %0 {offsets = [0, 4], sizes = [8, 1], strides = [1, 1]} : vector<8x5xf32> to vector<8x1xf32>
    %12 = vector.extract_strided_slice %1 {offsets = [0, 4], sizes = [8, 1], strides = [1, 1]} : vector<8x5xf32> to vector<8x1xf32>
    %13 = arith.maximumf %11, %12 : vector<8x1xf32>
    %14 = arith.subf %10, %4 : vector<8x1xf32>
    %15 = tpu.reciprocal %14 : vector<8x1xf32> -> vector<8x1xf32>
    %16 = arith.subf %13, %7 : vector<8x1xf32>
    %17 = tpu.reciprocal %16 : vector<8x1xf32> -> vector<8x1xf32>
    %18 = vector.extract_strided_slice %0 {offsets = [0, 1], sizes = [8, 1], strides = [1, 1]} : vector<8x5xf32> to vector<8x1xf32>
    %19 = arith.subf %18, %4 : vector<8x1xf32>
    %20 = arith.mulf %19, %15 : vector<8x1xf32>
    %21 = vector.extract_strided_slice %0 {offsets = [0, 2], sizes = [8, 1], strides = [1, 1]} : vector<8x5xf32> to vector<8x1xf32>
    %22 = arith.subf %21, %7 : vector<8x1xf32>
    %23 = arith.mulf %22, %17 : vector<8x1xf32>
    %24 = vector.extract_strided_slice %0 {offsets = [0, 3], sizes = [8, 1], strides = [1, 1]} : vector<8x5xf32> to vector<8x1xf32>
    %25 = arith.subf %24, %10 : vector<8x1xf32>
    %26 = arith.mulf %25, %15 : vector<8x1xf32>
    %27 = vector.extract_strided_slice %0 {offsets = [0, 4], sizes = [8, 1], strides = [1, 1]} : vector<8x5xf32> to vector<8x1xf32>
    %28 = arith.subf %27, %13 : vector<8x1xf32>
    %29 = arith.mulf %28, %17 : vector<8x1xf32>
    %30 = vector.extract_strided_slice %1 {offsets = [0, 1], sizes = [8, 1], strides = [1, 1]} : vector<8x5xf32> to vector<8x1xf32>
    %31 = arith.subf %30, %4 : vector<8x1xf32>
    %32 = arith.mulf %31, %15 : vector<8x1xf32>
    %33 = vector.extract_strided_slice %1 {offsets = [0, 2], sizes = [8, 1], strides = [1, 1]} : vector<8x5xf32> to vector<8x1xf32>
    %34 = arith.subf %33, %7 : vector<8x1xf32>
    %35 = arith.mulf %34, %17 : vector<8x1xf32>
    %36 = vector.extract_strided_slice %1 {offsets = [0, 3], sizes = [8, 1], strides = [1, 1]} : vector<8x5xf32> to vector<8x1xf32>
    %37 = arith.subf %36, %10 : vector<8x1xf32>
    %38 = arith.mulf %37, %15 : vector<8x1xf32>
    %39 = vector.extract_strided_slice %1 {offsets = [0, 4], sizes = [8, 1], strides = [1, 1]} : vector<8x5xf32> to vector<8x1xf32>
    %40 = arith.subf %39, %13 : vector<8x1xf32>
    %41 = arith.mulf %40, %17 : vector<8x1xf32>
    %42 = tpu.concatenate %20, %23, %26, %29, %32, %35, %38, %41 in 1 : vector<8x1xf32>, vector<8x1xf32>, vector<8x1xf32>, vector<8x1xf32>, vector<8x1xf32>, vector<8x1xf32>, vector<8x1xf32>, vector<8x1xf32> -> vector<8x8xf32>
    %43 = arith.truncf %42 : vector<8x8xf32> to vector<8x8xbf16>
    %c0_3 = arith.constant 0 : index
    %c0_4 = arith.constant 0 : index
    %44 = vector.load %arg3[%c0_3, %c0_4] : memref<8x128xbf16, #tpu.memory_space<vmem>>, vector<8x128xbf16>
    %cst = arith.constant dense<0.000000e+00> : vector<8x128xf32>
    %45 = tpu.matmul %43, %44, %cst {dimension_numbers = #tpu.dot_dimension_numbers<[1], [0], [0], [1], [0, 0, 1, 1], [], []>} : vector<8x8xbf16>, vector<8x128xbf16>, vector<8x128xf32> -> vector<8x128xf32>
    %c0_5 = arith.constant 0 : index
    %c0_6 = arith.constant 0 : index
    %46 = vector.load %arg4[%c0_5, %c0_6] : memref<1x128xf32, #tpu.memory_space<vmem>>, vector<1x128xf32>
    %47 = vector.broadcast %46 : vector<1x128xf32> to vector<8x128xf32>
    %48 = arith.addf %45, %47 : vector<8x128xf32>
    %cst_7 = arith.constant 0.000000e+00 : f32
    %49 = vector.broadcast %cst_7 : f32 to vector<8x128xf32>
    %50 = arith.maximumf %48, %49 : vector<8x128xf32>
    %c0_8 = arith.constant 0 : index
    %c0_9 = arith.constant 0 : index
    %51 = vector.load %arg5[%c0_8, %c0_9] : memref<8x128xf32, #tpu.memory_space<vmem>>, vector<8x128xf32>
    tpu.vector_store %arg5[%c0_8, %c0_9], %50 {strides = array<i32>} : memref<8x128xf32, #tpu.memory_space<vmem>>, vector<8x128xf32>,
    return
  }
  func.func @transform_0(%arg0: i32) -> (i32, i32) {
    %c0_i32 = arith.constant 0 : i32
    %c0_i32_0 = arith.constant 0 : i32
    return %arg0, %c0_i32 : i32, i32
  }
  func.func @transform_1(%arg0: i32) -> (i32, i32) {
    %c0_i32 = arith.constant 0 : i32
    %c0_i32_0 = arith.constant 0 : i32
    return %arg0, %c0_i32 : i32, i32
  }
  func.func @transform_2(%arg0: i32) -> (i32, i32) {
    %c0_i32 = arith.constant 0 : i32
    %c0_i32_0 = arith.constant 0 : i32
    %c0_i32_1 = arith.constant 0 : i32
    return %c0_i32, %c0_i32_0 : i32, i32
  }
  func.func @transform_3(%arg0: i32) -> (i32, i32) {
    %c0_i32 = arith.constant 0 : i32
    %c0_i32_0 = arith.constant 0 : i32
    %c0_i32_1 = arith.constant 0 : i32
    return %c0_i32, %c0_i32_0 : i32, i32
  }
  func.func @transform_4(%arg0: i32) -> (i32, i32) {
    %c0_i32 = arith.constant 0 : i32
    %c0_i32_0 = arith.constant 0 : i32
    return %arg0, %c0_i32 : i32, i32
  }
}

module attributes {stable_mosaic.version = 11 : i64} {
  func.func @_linear_relu_kernel(%arg0: i32, %arg1: memref<8x70xbf16, #tpu.memory_space<vmem>>, %arg2: memref<70x128xbf16, #tpu.memory_space<vmem>>, %arg3: memref<1x128xf32, #tpu.memory_space<vmem>>, %arg4: memref<8x128xf32, #tpu.memory_space<vmem>>) attributes {dimension_semantics = [#tpu.dimension_semantics<parallel>], iteration_bounds = array<i64: 1>, scalar_prefetch = 0 : i64, scratch_operands = 0 : i64, tpu.core_type = #tpu.core_type<tc>, window_params = [{transform_indices = @transform_0, window_bounds = array<i64: 8, 70>}, {pipeline_mode = #tpu.pipeline_mode<synchronous>, transform_indices = @transform_1, window_bounds = array<i64: 70, 128>}, {pipeline_mode = #tpu.pipeline_mode<synchronous>, transform_indices = @transform_2, window_bounds = array<i64: 1, 128>}, {transform_indices = @transform_3, window_bounds = array<i64: 8, 128>}]} {
    %c0 = arith.constant 0 : index
    %c0_0 = arith.constant 0 : index
    %0 = vector.load %arg1[%c0, %c0_0] : memref<8x70xbf16, #tpu.memory_space<vmem>>, vector<8x70xbf16>
    %c0_1 = arith.constant 0 : index
    %c0_2 = arith.constant 0 : index
    %1 = vector.load %arg2[%c0_1, %c0_2] : memref<70x128xbf16, #tpu.memory_space<vmem>>, vector<70x128xbf16>
    %cst = arith.constant dense<0.000000e+00> : vector<8x128xf32>
    %2 = tpu.matmul %0, %1, %cst {dimension_numbers = #tpu.dot_dimension_numbers<[1], [0], [0], [1], [0, 0, 1, 1], [], []>} : vector<8x70xbf16>, vector<70x128xbf16>, vector<8x128xf32> -> vector<8x128xf32>
    %c0_3 = arith.constant 0 : index
    %c0_4 = arith.constant 0 : index
    %3 = vector.load %arg3[%c0_3, %c0_4] : memref<1x128xf32, #tpu.memory_space<vmem>>, vector<1x128xf32>
    %4 = vector.broadcast %3 : vector<1x128xf32> to vector<8x128xf32>
    %5 = arith.addf %2, %4 : vector<8x128xf32>
    %cst_5 = arith.constant 0.000000e+00 : f32
    %6 = vector.broadcast %cst_5 : f32 to vector<8x128xf32>
    %7 = arith.maximumf %5, %6 : vector<8x128xf32>
    %c0_6 = arith.constant 0 : index
    %c0_7 = arith.constant 0 : index
    %8 = vector.load %arg4[%c0_6, %c0_7] : memref<8x128xf32, #tpu.memory_space<vmem>>, vector<8x128xf32>
    tpu.vector_store %arg4[%c0_6, %c0_7], %7 {strides = array<i32>} : memref<8x128xf32, #tpu.memory_space<vmem>>, vector<8x128xf32>,
    return
  }
  func.func @transform_0(%arg0: i32) -> (i32, i32) {
    %c0_i32 = arith.constant 0 : i32
    %c0_i32_0 = arith.constant 0 : i32
    return %arg0, %c0_i32 : i32, i32
  }
  func.func @transform_1(%arg0: i32) -> (i32, i32) {
    %c0_i32 = arith.constant 0 : i32
    %c0_i32_0 = arith.constant 0 : i32
    %c0_i32_1 = arith.constant 0 : i32
    return %c0_i32, %c0_i32_0 : i32, i32
  }
  func.func @transform_2(%arg0: i32) -> (i32, i32) {
    %c0_i32 = arith.constant 0 : i32
    %c0_i32_0 = arith.constant 0 : i32
    %c0_i32_1 = arith.constant 0 : i32
    return %c0_i32, %c0_i32_0 : i32, i32
  }
  func.func @transform_3(%arg0: i32) -> (i32, i32) {
    %c0_i32 = arith.constant 0 : i32
    %c0_i32_0 = arith.constant 0 : i32
    return %arg0, %c0_i32 : i32, i32
  }
}

</mosaic_0001>

<llo_original>
// kernel: extract_rela_feature.6
$region0: #{extract_rela_feature.6}
  #allocation0 [shape = 'u32[]', space=smem, size = 0x4, offset = 0x4, fixed_abs, tag = 'smem constant byte address 0x4 - core index']
  #allocation1 [shape = 'u32[144,128]{1,0:T(1,128)}', space=vmem, size = 0x12000, scoped, tag = 'internal scratch']
  %s0 = inlined_call_operand.vmem [shape: bf16[2,8,300], index: 0, kind: input, shape index: {}]
  %s1 = inlined_call_operand.vmem [shape: bf16[2,300,128], index: 1, kind: input, shape index: {}]
  %s2 = inlined_call_operand.vmem [shape: f32[2,1,128], index: 2, kind: input, shape index: {}]
  %s3 = inlined_call_operand.vmem [shape: f32[2,8,128], index: 3, kind: output, shape index: {}]
  %s4 = sld [smem:[#allocation0]]
  $region45: #{extract_rela_feature.6} parent=0
    _
  %s6 = ssub.s32 1, %s4
  %s7 = scalar_select 0, %s6, %s4
  loop: start=0, step=1, limit=4
  $region2: #{extract_rela_feature.6} parent=0 // loop_pre_header
    _
  $region3: #{extract_rela_feature.6} parent=0 // loop_header
    %s9 = sphi 0, %s13
    %p10 = scmp.ge.s32.totalorder %s9, 4
    %s16 = sphi 0, %s28
    %s17 = sphi 0, %s24
    %s18 = sphi 0, %s16
    %s19 = sphi 0, %s17
    %s20 = sphi 0, %s18
    %s21 = sphi 0, %s19
    %s33 = sphi 0, %s35
    %s36 = sphi 0, %s33
    %s37 = sphi 0, %s36
    %s53 = sphi 0, %s37
    %s59 = sphi 0, %s61
    %s62 = sphi 0, %s59
    %s63 = sphi 0, %s62
    %s79 = sphi 0, %s63
    %s85 = sphi 0, %s87
    %s88 = sphi 0, %s85
    %s89 = sphi 0, %s88
    %s105 = sphi 0, %s89
    %s113 = sphi 0, %s115
    %s116 = sphi 0, %s113
    %s117 = sphi 0, %s116
    %s133 = sphi 0, %s117
  $region4: #{extract_rela_feature.6} parent=0 // loop_header_branch
    %12 = sbr.rel (%p10) target = $region8
  $region5: #{extract_rela_feature.6} parent=0 // loop_body
    %s14 = ssub.s32 %s9, 1
    %s15 = ssub.s32 %s9, 2
    %s22 = sadd.s32 1, %s17
    %p23 = scmp.ge.s32.totalorder %s22, 1
    %s24 = scalar_select %p23, 0, %s22
    %s25 = sadd.s32 1, %s16
    %s26 = scalar_select %p23, %s25, %s16
    %p27 = scmp.ge.s32.totalorder %s26, 2
    %s28 = scalar_select %p27, 0, %s26
    %s29 = ssub.s32 %s16, %s28
    %s30 = ssub.s32 %s17, %s24
    %s31 = sor.u32 %s29, %s30
    %p32 = scmp.eq.s32.totalorder %s31, 0
    %s34 = sadd.s32 %s33, 1
    %s35 = scalar_select %p32, %s33, %s34
    %p38 = pneg %p32
    %p39 = scmp.eq.s32.totalorder %s9, 1
    %p40 = por %p38, %p39
    %p41 = scmp.ne.s32.totalorder %s33, %s36
    %p42 = scmp.eq.s32.totalorder %s9, 0
    %p43 = por %p41, %p42
    %p44 = scmp.ne.s32.totalorder %s33, %s36
    %p45 = scmp.eq.s32.totalorder %s14, 1
    %p46 = por %p44, %p45
    %p47 = scmp.ne.s32.totalorder %s36, %s37
    %p48 = scmp.eq.s32.totalorder %s14, 0
    %p49 = por %p47, %p48
    %p50 = scmp.ne.s32.totalorder %s36, %s37
    %p51 = scmp.eq.s32.totalorder %s15, 1
    %p52 = por %p50, %p51
    %p54 = scmp.ne.s32.totalorder %s37, %s53
    %p55 = scmp.eq.s32.totalorder %s15, 0
    %p56 = por %p54, %p55
    %s57 = ssub.s32 %s16, %s28
    %p58 = scmp.eq.s32.totalorder %s57, 0
    %s60 = sadd.s32 %s59, 1
    %s61 = scalar_select %p58, %s59, %s60
    %p64 = pneg %p58
    %p65 = scmp.eq.s32.totalorder %s9, 1
    %p66 = por %p64, %p65
    %p67 = scmp.ne.s32.totalorder %s59, %s62
    %p68 = scmp.eq.s32.totalorder %s9, 0
    %p69 = por %p67, %p68
    %p70 = scmp.ne.s32.totalorder %s59, %s62
    %p71 = scmp.eq.s32.totalorder %s14, 1
    %p72 = por %p70, %p71
    %p73 = scmp.ne.s32.totalorder %s62, %s63
    %p74 = scmp.eq.s32.totalorder %s14, 0
    %p75 = por %p73, %p74
    %p76 = scmp.ne.s32.totalorder %s62, %s63
    %p77 = scmp.eq.s32.totalorder %s15, 1
    %p78 = por %p76, %p77
    %p80 = scmp.ne.s32.totalorder %s63, %s79
    %p81 = scmp.eq.s32.totalorder %s15, 0
    %p82 = por %p80, %p81
    %s83 = ssub.s32 %s16, %s28
    %p84 = scmp.eq.s32.totalorder %s83, 0
    %s86 = sadd.s32 %s85, 1
    %s87 = scalar_select %p84, %s85, %s86
    %p90 = pneg %p84
    %p91 = scmp.eq.s32.totalorder %s9, 1
    %p92 = por %p90, %p91
    %p93 = scmp.ne.s32.totalorder %s85, %s88
    %p94 = scmp.eq.s32.totalorder %s9, 0
    %p95 = por %p93, %p94
    %p96 = scmp.ne.s32.totalorder %s85, %s88
    %p97 = scmp.eq.s32.totalorder %s14, 1
    %p98 = por %p96, %p97
    %p99 = scmp.ne.s32.totalorder %s88, %s89
    %p100 = scmp.eq.s32.totalorder %s14, 0
    %p101 = por %p99, %p100
    %p102 = scmp.ne.s32.totalorder %s88, %s89
    %p103 = scmp.eq.s32.totalorder %s15, 1
    %p104 = por %p102, %p103
    %p106 = scmp.ne.s32.totalorder %s89, %s105
    %p107 = scmp.eq.s32.totalorder %s15, 0
    %p108 = por %p106, %p107
    %s109 = ssub.s32 %s16, %s28
    %s110 = ssub.s32 %s17, %s24
    %s111 = sor.u32 %s109, %s110
    %p112 = scmp.eq.s32.totalorder %s111, 0
    %s114 = sadd.s32 %s113, 1
    %s115 = scalar_select %p112, %s113, %s114
    %p118 = pneg %p112
    %p119 = scmp.eq.s32.totalorder %s9, 1
    %p120 = por %p118, %p119
    %p121 = scmp.ne.s32.totalorder %s113, %s116
    %p122 = scmp.eq.s32.totalorder %s9, 0
    %p123 = por %p121, %p122
    %p124 = scmp.ne.s32.totalorder %s113, %s116
    %p125 = scmp.eq.s32.totalorder %s14, 1
    %p126 = por %p124, %p125
    %p127 = scmp.ne.s32.totalorder %s116, %s117
    %p128 = scmp.eq.s32.totalorder %s14, 0
    %p129 = por %p127, %p128
    %p130 = scmp.ne.s32.totalorder %s116, %s117
    %p131 = scmp.eq.s32.totalorder %s15, 1
    %p132 = por %p130, %p131
    %p134 = scmp.ne.s32.totalorder %s117, %s133
    %p135 = scmp.eq.s32.totalorder %s15, 0
    %p136 = por %p134, %p135
    %p137 = scmp.le.s32.totalorder 1, %s9
    %p138 = scmp.lt.s32.totalorder %s9, 3
    %p139 = pnand %p137, %p138
    %p140 = pneg %p139
    // Predicated region
    $region9: #{extract_rela_feature.6} parent=5 // pred_check
      _
    $region10: #{extract_rela_feature.6} parent=5 // pred_check_branch
      %142 = sbr.rel (%p139) target = $region12
    $region11: #{extract_rela_feature.6} parent=5 // pred_region
      %s143 = ssub.s32 %s9, 1
    $region12: #{extract_rela_feature.6} parent=5 // pred_fallthru
      _
    %p144 = scmp.lt.s32.totalorder %s9, 2
    // Predicated region
    $region13: #{extract_rela_feature.6} parent=5 // pred_check
      %p145 = pneg %p144
    $region14: #{extract_rela_feature.6} parent=5 // pred_check_branch
      %147 = sbr.rel (%p145) target = $region16
    $region15: #{extract_rela_feature.6} parent=5 // pred_region
      // Predicated region
      $region17: #{extract_rela_feature.6} parent=15 // pred_check
        %p148 = pneg %p43
      $region18: #{extract_rela_feature.6} parent=15 // pred_check_branch
        %150 = sbr.rel (%p148) target = $region20
      $region19: #{extract_rela_feature.6} parent=15 // pred_region
        %p151 = scmp.lt.s32.totalorder %s16, 1
        %s152 = scalar_select %p151, %s16, 1
        %p153 = scmp.lt.s32.totalorder %s17, 0
        %s154 = scalar_select %p153, %s17, 0
        %s155 = smul.addr %s154, 3
        %s156 = smul.addr %s152, 3
        %s157 = sadd.s32 %s155, %s156
        %s158 = smul.addr %s157, 4
        %s159 = scalar_lea.vmem %s0, %s158
      $region20: #{extract_rela_feature.6} parent=15 // pred_fallthru
        _
      // Predicated region
      $region21: #{extract_rela_feature.6} parent=15 // pred_check
        %p160 = pneg %p69
      $region22: #{extract_rela_feature.6} parent=15 // pred_check_branch
        %162 = sbr.rel (%p160) target = $region24
      $region23: #{extract_rela_feature.6} parent=15 // pred_region
        %p163 = scmp.lt.s32.totalorder %s16, 1
        %s164 = scalar_select %p163, %s16, 1
        %s165 = smul.addr %s164, 38
        %s166 = smul.addr %s165, 4
        %s167 = scalar_lea.vmem %s1, %s166
      $region24: #{extract_rela_feature.6} parent=15 // pred_fallthru
        _
      // Predicated region
      $region25: #{extract_rela_feature.6} parent=15 // pred_check
        %p168 = pneg %p95
      $region26: #{extract_rela_feature.6} parent=15 // pred_check_branch
        %170 = sbr.rel (%p168) target = $region28
      $region27: #{extract_rela_feature.6} parent=15 // pred_region
        %p171 = scmp.lt.s32.totalorder %s16, 1
        %s172 = scalar_select %p171, %s16, 1
        %s173 = scalar_lea.vmem %s2, %s172
      $region28: #{extract_rela_feature.6} parent=15 // pred_fallthru
        _
    $region16: #{extract_rela_feature.6} parent=5 // pred_fallthru
      _
    %p174 = scmp.le.s32.totalorder 1, %s9
    %p175 = scmp.lt.s32.totalorder %s9, 3
    %p176 = pnand %p174, %p175
    %p177 = pneg %p176
    // Predicated region
    $region29: #{extract_rela_feature.6} parent=5 // pred_check
      _
    $region30: #{extract_rela_feature.6} parent=5 // pred_check_branch
      %179 = sbr.rel (%p176) target = $region32
    $region31: #{extract_rela_feature.6} parent=5 // pred_region
      %s180 = ssub.s32 %s9, 1
      %p181 = scmp.lt.s32.totalorder %s18, 1
      %s182 = scalar_select %p181, %s18, 1
      %p183 = scmp.lt.s32.totalorder %s19, 0
      %s184 = scalar_select %p183, %s19, 0
      %s185 = smul.addr %s184, 3
      %s186 = smul.addr %s182, 3
      %s187 = sadd.s32 %s185, %s186
      %s188 = smul.addr %s187, 4
      %s189 = scalar_lea.vmem %s0, %s188
      %p190 = pneg %p49
      %p191 = pneg %p46
      %p192 = scmp.lt.s32.totalorder %s18, 1
      %s193 = scalar_select %p192, %s18, 1
      %s194 = smul.addr %s193, 38
      %s195 = smul.addr %s194, 4
      %s196 = scalar_lea.vmem %s1, %s195
      %p197 = pneg %p75
      %p198 = pneg %p72
      %p199 = scmp.lt.s32.totalorder %s18, 1
      %s200 = scalar_select %p199, %s18, 1
      %s201 = scalar_lea.vmem %s2, %s200
      %p202 = pneg %p101
      %p203 = pneg %p98
      %p204 = pneg %p129
      %p205 = pneg %p126
      %p206 = scmp.lt.s32.totalorder %s18, 1
      %s207 = scalar_select %p206, %s18, 1
      %p208 = scmp.lt.s32.totalorder %s19, 0
      %s209 = scalar_select %p208, %s19, 0
      %s210 = sadd.s32 %s209, %s207
      %s211 = smul.addr %s210, 8
      %s212 = scalar_lea.vmem %s3, %s211
      %p213 = scmp.lt.s32.totalorder %s18, 1
      %s214 = scalar_select %p213, %s18, 1
      %p215 = scmp.lt.s32.totalorder %s19, 0
      %s216 = scalar_select %p215, %s19, 0
      %s217 = smul.addr %s216, 3
      %s218 = smul.addr %s214, 3
      %s219 = sadd.s32 %s217, %s218
      %s220 = smul.addr %s219, 4
      %s221 = scalar_lea.vmem %s0, %s220
      %p222 = scmp.lt.s32.totalorder %s18, 1
      %s223 = scalar_select %p222, %s18, 1
      %s224 = smul.addr %s223, 38
      %s225 = smul.addr %s224, 4
      %s226 = scalar_lea.vmem %s1, %s225
      %p227 = scmp.lt.s32.totalorder %s18, 1
      %s228 = scalar_select %p227, %s18, 1
      %s229 = scalar_lea.vmem %s2, %s228
      %p230 = scmp.lt.s32.totalorder %s18, 1
      %s231 = scalar_select %p230, %s18, 1
      %p232 = scmp.lt.s32.totalorder %s19, 0
      %s233 = scalar_select %p232, %s19, 0
      %s234 = sadd.s32 %s233, %s231
      %s235 = smul.addr %s234, 8
      %s236 = scalar_lea.vmem %s3, %s235
      %v238 = vld [vmem:[%s221] sm:$0xff]
      %v239 = vld [vmem:[%s221 + $0x8] sm:$0xf]
      %v240 = vld [vmem:[%s226] sm:$0xf]
      %v241 = vld [vmem:[%s226 + $0x4] sm:$0xf]
      %v242 = vld [vmem:[%s226 + $0x8] sm:$0xf]
      %v243 = vld [vmem:[%s226 + $0xc] sm:$0xf]
      %v244 = vld [vmem:[%s226 + $0x10] sm:$0xf]
      %v245 = vld [vmem:[%s226 + $0x14] sm:$0xf]
      %v246 = vld [vmem:[%s226 + $0x18] sm:$0xf]
      %v247 = vld [vmem:[%s226 + $0x1c] sm:$0xf]
      %v248 = vld [vmem:[%s226 + $0x20] sm:$0xf]
      %v249 = vld [vmem:[%s226 + $0x24] sm:$0xf]
      %v250 = vld [vmem:[%s226 + $0x28] sm:$0xf]
      %v251 = vld [vmem:[%s226 + $0x2c] sm:$0xf]
      %v252 = vld [vmem:[%s226 + $0x30] sm:$0xf]
      %v253 = vld [vmem:[%s226 + $0x34] sm:$0xf]
      %v254 = vld [vmem:[%s226 + $0x38] sm:$0xf]
      %v255 = vld [vmem:[%s226 + $0x3c] sm:$0xf]
      %v256 = vld [vmem:[%s226 + $0x40] sm:$0xf]
      %v257 = vld [vmem:[%s226 + $0x44] sm:$0xf]
      %v258 = vld [vmem:[%s226 + $0x48] sm:$0xf]
      %v259 = vld [vmem:[%s226 + $0x4c] sm:$0xf]
      %v260 = vld [vmem:[%s226 + $0x50] sm:$0xf]
      %v261 = vld [vmem:[%s226 + $0x54] sm:$0xf]
      %v262 = vld [vmem:[%s226 + $0x58] sm:$0xf]
      %v263 = vld [vmem:[%s226 + $0x5c] sm:$0xf]
      %v264 = vld [vmem:[%s226 + $0x60] sm:$0xf]
      %v265 = vld [vmem:[%s226 + $0x64] sm:$0xf]
      %v266 = vld [vmem:[%s226 + $0x68] sm:$0xf]
      %v267 = vld [vmem:[%s226 + $0x6c] sm:$0xf]
      %v268 = vld [vmem:[%s226 + $0x70] sm:$0xf]
      %v269 = vld [vmem:[%s226 + $0x74] sm:$0xf]
      %v270 = vld [vmem:[%s226 + $0x78] sm:$0xf]
      %v271 = vld [vmem:[%s226 + $0x7c] sm:$0xf]
      %v272 = vld [vmem:[%s226 + $0x80] sm:$0xf]
      %v273 = vld [vmem:[%s226 + $0x84] sm:$0xf]
      %v274 = vld [vmem:[%s226 + $0x88] sm:$0xf]
      %v275 = vld [vmem:[%s226 + $0x8c] sm:$0xf]
      %v276 = vld [vmem:[%s226 + $0x90] sm:$0xf]
      %v277 = vld [vmem:[%s226 + $0x94] sm:$0x3]
      %v278 = vld [vmem:[%s229] sm:$0x1]
      %v280 = vlaneseq
      %v281 = vshrl.u32 %v280, 7
      %v282 = vsub.s32 0, %v281
      %v283 = vrot.slane %v278, %v282
      %v287 = vunpack.c.l.b16 %v238
      %v288 = vunpack.c.h.b16 %v238
      %v289 = vunpack.c.l.b16 %v239
      %v290 = vpack.c.b16 %v287, %v287
      %v291 = vpack.c.b16 %v288, %v288
      %v292 = vpack.c.b16 %v289, %v289
      %v333 = vunpack.c.l.b16 %v240
      %v334 = vunpack.c.l.b16 %v241
      %v335 = vunpack.c.l.b16 %v242
      %v336 = vunpack.c.l.b16 %v243
      %v337 = vunpack.c.l.b16 %v244
      %v338 = vunpack.c.l.b16 %v245
      %v339 = vunpack.c.l.b16 %v246
      %v340 = vunpack.c.l.b16 %v247
      %v341 = vunpack.c.l.b16 %v248
      %v342 = vunpack.c.l.b16 %v249
      %v343 = vunpack.c.l.b16 %v250
      %v344 = vunpack.c.l.b16 %v251
      %v345 = vunpack.c.l.b16 %v252
      %v346 = vunpack.c.l.b16 %v253
      %v347 = vunpack.c.l.b16 %v254
      %v348 = vunpack.c.l.b16 %v255
      %v349 = vunpack.c.l.b16 %v256
      %v350 = vunpack.c.l.b16 %v257
      %v351 = vunpack.c.l.b16 %v258
      %v352 = vunpack.c.l.b16 %v259
      %v353 = vunpack.c.l.b16 %v260
      %v354 = vunpack.c.l.b16 %v261
      %v355 = vunpack.c.l.b16 %v262
      %v356 = vunpack.c.l.b16 %v263
      %v357 = vunpack.c.l.b16 %v264
      %v358 = vunpack.c.l.b16 %v265
      %v359 = vunpack.c.l.b16 %v266
      %v360 = vunpack.c.l.b16 %v267
      %v361 = vunpack.c.l.b16 %v268
      %v362 = vunpack.c.l.b16 %v269
      %v363 = vunpack.c.l.b16 %v270
      %v364 = vunpack.c.l.b16 %v271
      %v365 = vunpack.c.l.b16 %v272
      %v366 = vunpack.c.l.b16 %v273
      %v367 = vunpack.c.l.b16 %v274
      %v368 = vunpack.c.l.b16 %v275
      %v369 = vunpack.c.l.b16 %v276
      %v370 = vunpack.c.l.b16 %v277
      %v371 = vpack.c.b16 %v334, %v333
      %v372 = vpack.c.b16 %v336, %v335
      %v373 = vpack.c.b16 %v338, %v337
      %v374 = vpack.c.b16 %v340, %v339
      %v375 = vpack.c.b16 %v342, %v341
      %v376 = vpack.c.b16 %v344, %v343
      %v377 = vpack.c.b16 %v346, %v345
      %v378 = vpack.c.b16 %v348, %v347
      %v379 = vpack.c.b16 %v350, %v349
      %v380 = vpack.c.b16 %v352, %v351
      %v381 = vpack.c.b16 %v354, %v353
      %v382 = vpack.c.b16 %v356, %v355
      %v383 = vpack.c.b16 %v358, %v357
      %v384 = vpack.c.b16 %v360, %v359
      %v385 = vpack.c.b16 %v362, %v361
      %v386 = vpack.c.b16 %v364, %v363
      %v387 = vpack.c.b16 %v366, %v365
      %v388 = vpack.c.b16 %v368, %v367
      %v389 = vpack.c.b16 %v370, %v369
      %vm408 = vcmask 359424
      %v410 = vsel %vm408, %v292, 0
      %vm412 = vcmask 1045504
      %v414 = vsel %vm412, %v389, 0
      %416 = vmatprep.subr.bf16.mxu0 0
      %417 = vmatpush1.bf16.msra.mxu0 %v378
      %418 = vmatprep.subr.bf16.mxu0 0
      %419 = vmatpush1.bf16.msra.mxu0 %v377
      %420 = vmatprep.subr.bf16.mxu0 0
      %421 = vmatpush1.bf16.msra.mxu0 %v376
      %422 = vmatprep.subr.bf16.mxu0 0
      %423 = vmatpush1.bf16.msra.mxu0 %v375
      %424 = vmatprep.subr.bf16.mxu0 0
      %425 = vmatpush1.bf16.msra.mxu0 %v374
      %426 = vmatprep.subr.bf16.mxu0 0
      %427 = vmatpush1.bf16.msra.mxu0 %v373
      %428 = vmatprep.subr.bf16.mxu0 0
      %429 = vmatpush1.bf16.msra.mxu0 %v372
      %430 = vmatprep.subr.bf16.mxu0 0
      %431 = vmatpush1.bf16.msra.mxu0 %v371
      %432 = vmatprep.subr.bf16.mxu0 0
      %433 = vmatpush2.bf16.msra.mxu0 %v386
      %434 = vmatprep.subr.bf16.mxu0 0
      %435 = vmatpush2.bf16.msra.mxu0 %v385
      %436 = vmatprep.subr.bf16.mxu0 0
      %437 = vmatpush2.bf16.msra.mxu0 %v384
      %438 = vmatprep.subr.bf16.mxu0 0
      %439 = vmatpush2.bf16.msra.mxu0 %v383
      %440 = vmatprep.subr.bf16.mxu0 0
      %441 = vmatpush2.bf16.msra.mxu0 %v382
      %442 = vmatprep.subr.bf16.mxu0 0
      %443 = vmatpush2.bf16.msra.mxu0 %v381
      %444 = vmatprep.subr.bf16.mxu0 0
      %445 = vmatpush2.bf16.msra.mxu0 %v380
      %446 = vmatprep.subr.bf16.mxu0 0
      %447 = vmatpush2.bf16.msra.mxu0 %v379
      %448 = vmatprep.mubr.bf16.mxu0 %v291
      %449 = vmatmul.mubr.bf16.gmra.mxu0 %v290
      %v450 = vpop.f32.mrf.mxu0
      %v451 = vadd.f32 %v283, %v450
      %v452 = vpop.f32.mrf.mxu0
      %v453 = vpop.f32.mrf.mxu0
      %v454 = vpop.f32.mrf.mxu0
      %455 = vdwg.mxu0
      %456 = vmatprep.subr.bf16.mxu0 0
      %457 = vmatpush1.bf16.msra.mxu0 0
      %458 = vmatprep.subr.bf16.mxu0 0
      %459 = vmatpush1.bf16.msra.mxu0 0
      %460 = vmatprep.subr.bf16.mxu0 0
      %461 = vmatpush1.bf16.msra.mxu0 0
      %462 = vmatprep.subr.bf16.mxu0 0
      %463 = vmatpush1.bf16.msra.mxu0 0
      %464 = vmatprep.subr.bf16.mxu0 0
      %465 = vmatpush1.bf16.msra.mxu0 0
      %466 = vmatprep.subr.bf16.mxu0 0
      %467 = vmatpush1.bf16.msra.mxu0 %v414
      %468 = vmatprep.subr.bf16.mxu0 0
      %469 = vmatpush1.bf16.msra.mxu0 %v388
      %470 = vmatprep.subr.bf16.mxu0 0
      %471 = vmatpush1.bf16.msra.mxu0 %v387
      %472 = vmatprep.subr.bf16.mxu0 0
      %473 = vmatpush2.bf16.msra.mxu0 0
      %474 = vmatprep.subr.bf16.mxu0 0
      %475 = vmatpush2.bf16.msra.mxu0 0
      %476 = vmatprep.subr.bf16.mxu0 0
      %477 = vmatpush2.bf16.msra.mxu0 0
      %478 = vmatprep.subr.bf16.mxu0 0
      %479 = vmatpush2.bf16.msra.mxu0 0
      %480 = vmatprep.subr.bf16.mxu0 0
      %481 = vmatpush2.bf16.msra.mxu0 0
      %482 = vmatprep.subr.bf16.mxu0 0
      %483 = vmatpush2.bf16.msra.mxu0 0
      %484 = vmatprep.subr.bf16.mxu0 0
      %485 = vmatpush2.bf16.msra.mxu0 0
      %486 = vmatprep.subr.bf16.mxu0 0
      %487 = vmatpush2.bf16.msra.mxu0 0
      %488 = vmatprep.mubr.bf16.mxu0 0
      %489 = vmatmul.mubr.bf16.gmra.mxu0 %v410
      %v490 = vpop.f32.mrf.mxu0
      %v491 = vadd.f32 %v451, %v490
      %v492 = vpop.f32.mrf.mxu0
      %v493 = vpop.f32.mrf.mxu0
      %v494 = vpop.f32.mrf.mxu0
      %495 = vdwg.mxu0
      %v496 = vmax.f32 %v491, 0.0
      %497 = vst [vmem:[%s236] sm:$0xff] %v496
      %p498 = scmp.lt.s32.totalorder %s18, 1
      %s499 = scalar_select %p498, %s18, 1
      %p500 = scmp.lt.s32.totalorder %s19, 0
      %s501 = scalar_select %p500, %s19, 0
      %s502 = sadd.s32 %s501, %s499
      %s503 = smul.addr %s502, 8
      %s504 = scalar_lea.vmem %s3, %s503
      // Predicated region
      $region33: #{extract_rela_feature.6} parent=31 // pred_check
        %p505 = pneg %p126
      $region34: #{extract_rela_feature.6} parent=31 // pred_check_branch
        %507 = sbr.rel (%p505) target = $region36
      $region35: #{extract_rela_feature.6} parent=31 // pred_region
        _
      $region36: #{extract_rela_feature.6} parent=31 // pred_fallthru
        _
    $region32: #{extract_rela_feature.6} parent=5 // pred_fallthru
      _
    %p508 = scmp.le.s32.totalorder 2, %s9
    // Predicated region
    $region37: #{extract_rela_feature.6} parent=5 // pred_check
      %p509 = pneg %p508
    $region38: #{extract_rela_feature.6} parent=5 // pred_check_branch
      %511 = sbr.rel (%p509) target = $region40
    $region39: #{extract_rela_feature.6} parent=5 // pred_region
      %s512 = ssub.s32 %s9, 2
      // Predicated region
      $region41: #{extract_rela_feature.6} parent=39 // pred_check
        %p513 = pneg %p132
      $region42: #{extract_rela_feature.6} parent=39 // pred_check_branch
        %515 = sbr.rel (%p513) target = $region44
      $region43: #{extract_rela_feature.6} parent=39 // pred_region
        %p516 = scmp.lt.s32.totalorder %s20, 1
        %s517 = scalar_select %p516, %s20, 1
        %p518 = scmp.lt.s32.totalorder %s21, 0
        %s519 = scalar_select %p518, %s21, 0
        %s520 = sadd.s32 %s519, %s517
        %s521 = smul.addr %s520, 8
        %s522 = scalar_lea.vmem %s3, %s521
      $region44: #{extract_rela_feature.6} parent=39 // pred_fallthru
        _
    $region40: #{extract_rela_feature.6} parent=5 // pred_fallthru
      _
  $region6: #{extract_rela_feature.6} parent=0 // loop_footer
    %s13 = sadd.s32 1, %s9
  $region7: #{extract_rela_feature.6} parent=0 // loop_footer_branch
    %8 = sbr.rel target = $region3
  $region8: #{extract_rela_feature.6} parent=0 // loop_exit
    _

// kernel: extract_rela_feature.4
$region0: #{extract_rela_feature.4}
  #allocation0 [shape = 'u32[]', space=smem, size = 0x4, offset = 0x4, fixed_abs, tag = 'smem constant byte address 0x4 - core index']
  #allocation1 [shape = 'u32[144,128]{1,0:T(1,128)}', space=vmem, size = 0x12000, scoped, tag = 'internal scratch']
  %s0 = inlined_call_operand.vmem [shape: f32[16,256], index: 0, kind: input, shape index: {}]
  %s1 = inlined_call_operand.vmem [shape: bf16[256,256], index: 1, kind: input, shape index: {}]
  %s2 = inlined_call_operand.vmem [shape: f32[1,256], index: 2, kind: input, shape index: {}]
  %s3 = inlined_call_operand.vmem [shape: f32[16,256], index: 3, kind: output, shape index: {}]
  %s4 = sld [smem:[#allocation0]]
  $region22: #{extract_rela_feature.4} parent=0
    _
  %s6 = ssub.s32 1, %s4
  %s7 = scalar_select 0, %s6, %s4
  // Predicated region
  $region2: #{extract_rela_feature.4} parent=0 // pred_check
    _
  $region3: #{extract_rela_feature.4} parent=0 // pred_check_branch
    %9 = sbr.rel (0) target = $region5
  $region4: #{extract_rela_feature.4} parent=0 // pred_region
    _
  $region5: #{extract_rela_feature.4} parent=0 // pred_fallthru
    _
  // Predicated region
  $region6: #{extract_rela_feature.4} parent=0 // pred_check
    _
  $region7: #{extract_rela_feature.4} parent=0 // pred_check_branch
    %11 = sbr.rel (0) target = $region9
  $region8: #{extract_rela_feature.4} parent=0 // pred_region
    _
  $region9: #{extract_rela_feature.4} parent=0 // pred_fallthru
    _
  // Predicated region
  $region10: #{extract_rela_feature.4} parent=0 // pred_check
    _
  $region11: #{extract_rela_feature.4} parent=0 // pred_check_branch
    %13 = sbr.rel (0) target = $region13
  $region12: #{extract_rela_feature.4} parent=0 // pred_region
    _
  $region13: #{extract_rela_feature.4} parent=0 // pred_fallthru
    _
  %v14 = vld [vmem:[%s0] sm:$0xff]
  %v15 = vld [vmem:[%s0 + $0x8] sm:$0xff]
  %v16 = vld [vmem:[%s0 + $0x10] sm:$0xff]
  %v17 = vld [vmem:[%s0 + $0x18] sm:$0xff]
  %v18 = vpack.c.bf16 %v16, %v14
  %v19 = vpack.c.bf16 %v17, %v15
  %v20 = vld [vmem:[%s1] sm:$0xff]
  %v21 = vld [vmem:[%s1 + $0x8] sm:$0xff]
  %v22 = vld [vmem:[%s1 + $0x10] sm:$0xff]
  %v23 = vld [vmem:[%s1 + $0x18] sm:$0xff]
  %v24 = vld [vmem:[%s1 + $0x20] sm:$0xff]
  %v25 = vld [vmem:[%s1 + $0x28] sm:$0xff]
  %v26 = vld [vmem:[%s1 + $0x30] sm:$0xff]
  %v27 = vld [vmem:[%s1 + $0x38] sm:$0xff]
  %v28 = vld [vmem:[%s1 + $0x40] sm:$0xff]
  %v29 = vld [vmem:[%s1 + $0x48] sm:$0xff]
  %v30 = vld [vmem:[%s1 + $0x50] sm:$0xff]
  %v31 = vld [vmem:[%s1 + $0x58] sm:$0xff]
  %v32 = vld [vmem:[%s1 + $0x60] sm:$0xff]
  %v33 = vld [vmem:[%s1 + $0x68] sm:$0xff]
  %v34 = vld [vmem:[%s1 + $0x70] sm:$0xff]
  %v35 = vld [vmem:[%s1 + $0x78] sm:$0xff]
  %v36 = vld [vmem:[%s1 + $0x80] sm:$0xff]
  %v37 = vld [vmem:[%s1 + $0x88] sm:$0xff]
  %v38 = vld [vmem:[%s1 + $0x90] sm:$0xff]
  %v39 = vld [vmem:[%s1 + $0x98] sm:$0xff]
  %v40 = vld [vmem:[%s1 + $0xa0] sm:$0xff]
  %v41 = vld [vmem:[%s1 + $0xa8] sm:$0xff]
  %v42 = vld [vmem:[%s1 + $0xb0] sm:$0xff]
  %v43 = vld [vmem:[%s1 + $0xb8] sm:$0xff]
  %v44 = vld [vmem:[%s1 + $0xc0] sm:$0xff]
  %v45 = vld [vmem:[%s1 + $0xc8] sm:$0xff]
  %v46 = vld [vmem:[%s1 + $0xd0] sm:$0xff]
  %v47 = vld [vmem:[%s1 + $0xd8] sm:$0xff]
  %v48 = vld [vmem:[%s1 + $0xe0] sm:$0xff]
  %v49 = vld [vmem:[%s1 + $0xe8] sm:$0xff]
  %v50 = vld [vmem:[%s1 + $0xf0] sm:$0xff]
  %v51 = vld [vmem:[%s1 + $0xf8] sm:$0xff]
  %v52 = vld [vmem:[%s2] sm:$0x3]
  %v54 = vlaneseq
  %v55 = vshrl.u32 %v54, 7
  %v56 = vsub.s32 0, %v55
  %v57 = vrot.slane %v52, %v56
  %v58 = vlaneseq
  %v59 = vshrl.u32 %v58, 7
  %v60 = vsub.s32 1, %v59
  %v61 = vrot.slane %v52, %v60
  %v96 = vunpack.c.l.b16 %v20
  %v97 = vunpack.c.h.b16 %v20
  %v98 = vunpack.c.l.b16 %v21
  %v99 = vunpack.c.h.b16 %v21
  %v100 = vunpack.c.l.b16 %v22
  %v101 = vunpack.c.h.b16 %v22
  %v102 = vunpack.c.l.b16 %v23
  %v103 = vunpack.c.h.b16 %v23
  %v104 = vunpack.c.l.b16 %v24
  %v105 = vunpack.c.h.b16 %v24
  %v106 = vunpack.c.l.b16 %v25
  %v107 = vunpack.c.h.b16 %v25
  %v108 = vunpack.c.l.b16 %v26
  %v109 = vunpack.c.h.b16 %v26
  %v110 = vunpack.c.l.b16 %v27
  %v111 = vunpack.c.h.b16 %v27
  %v112 = vunpack.c.l.b16 %v28
  %v113 = vunpack.c.h.b16 %v28
  %v114 = vunpack.c.l.b16 %v29
  %v115 = vunpack.c.h.b16 %v29
  %v116 = vunpack.c.l.b16 %v30
  %v117 = vunpack.c.h.b16 %v30
  %v118 = vunpack.c.l.b16 %v31
  %v119 = vunpack.c.h.b16 %v31
  %v120 = vunpack.c.l.b16 %v32
  %v121 = vunpack.c.h.b16 %v32
  %v122 = vunpack.c.l.b16 %v33
  %v123 = vunpack.c.h.b16 %v33
  %v124 = vunpack.c.l.b16 %v34
  %v125 = vunpack.c.h.b16 %v34
  %v126 = vunpack.c.l.b16 %v35
  %v127 = vunpack.c.h.b16 %v35
  %v128 = vunpack.c.l.b16 %v36
  %v129 = vunpack.c.h.b16 %v36
  %v130 = vunpack.c.l.b16 %v37
  %v131 = vunpack.c.h.b16 %v37
  %v132 = vunpack.c.l.b16 %v38
  %v133 = vunpack.c.h.b16 %v38
  %v134 = vunpack.c.l.b16 %v39
  %v135 = vunpack.c.h.b16 %v39
  %v136 = vunpack.c.l.b16 %v40
  %v137 = vunpack.c.h.b16 %v40
  %v138 = vunpack.c.l.b16 %v41
  %v139 = vunpack.c.h.b16 %v41
  %v140 = vunpack.c.l.b16 %v42
  %v141 = vunpack.c.h.b16 %v42
  %v142 = vunpack.c.l.b16 %v43
  %v143 = vunpack.c.h.b16 %v43
  %v144 = vunpack.c.l.b16 %v44
  %v145 = vunpack.c.h.b16 %v44
  %v146 = vunpack.c.l.b16 %v45
  %v147 = vunpack.c.h.b16 %v45
  %v148 = vunpack.c.l.b16 %v46
  %v149 = vunpack.c.h.b16 %v46
  %v150 = vunpack.c.l.b16 %v47
  %v151 = vunpack.c.h.b16 %v47
  %v152 = vunpack.c.l.b16 %v48
  %v153 = vunpack.c.h.b16 %v48
  %v154 = vunpack.c.l.b16 %v49
  %v155 = vunpack.c.h.b16 %v49
  %v156 = vunpack.c.l.b16 %v50
  %v157 = vunpack.c.h.b16 %v50
  %v158 = vunpack.c.l.b16 %v51
  %v159 = vunpack.c.h.b16 %v51
  %v160 = vpack.c.b16 %v98, %v96
  %v161 = vpack.c.b16 %v99, %v97
  %v162 = vpack.c.b16 %v102, %v100
  %v163 = vpack.c.b16 %v103, %v101
  %v164 = vpack.c.b16 %v106, %v104
  %v165 = vpack.c.b16 %v107, %v105
  %v166 = vpack.c.b16 %v110, %v108
  %v167 = vpack.c.b16 %v111, %v109
  %v168 = vpack.c.b16 %v114, %v112
  %v169 = vpack.c.b16 %v115, %v113
  %v170 = vpack.c.b16 %v118, %v116
  %v171 = vpack.c.b16 %v119, %v117
  %v172 = vpack.c.b16 %v122, %v120
  %v173 = vpack.c.b16 %v123, %v121
  %v174 = vpack.c.b16 %v126, %v124
  %v175 = vpack.c.b16 %v127, %v125
  %v176 = vpack.c.b16 %v130, %v128
  %v177 = vpack.c.b16 %v131, %v129
  %v178 = vpack.c.b16 %v134, %v132
  %v179 = vpack.c.b16 %v135, %v133
  %v180 = vpack.c.b16 %v138, %v136
  %v181 = vpack.c.b16 %v139, %v137
  %v182 = vpack.c.b16 %v142, %v140
  %v183 = vpack.c.b16 %v143, %v141
  %v184 = vpack.c.b16 %v146, %v144
  %v185 = vpack.c.b16 %v147, %v145
  %v186 = vpack.c.b16 %v150, %v148
  %v187 = vpack.c.b16 %v151, %v149
  %v188 = vpack.c.b16 %v154, %v152
  %v189 = vpack.c.b16 %v155, %v153
  %v190 = vpack.c.b16 %v158, %v156
  %v191 = vpack.c.b16 %v159, %v157
  %224 = vmatprep.subr.bf16.mxu0 %v175
  %225 = vmatpush1.bf16.msra.mxu0 %v174
  %226 = vmatprep.subr.bf16.mxu0 %v173
  %227 = vmatpush1.bf16.msra.mxu0 %v172
  %228 = vmatprep.subr.bf16.mxu0 %v171
  %229 = vmatpush1.bf16.msra.mxu0 %v170
  %230 = vmatprep.subr.bf16.mxu0 %v169
  %231 = vmatpush1.bf16.msra.mxu0 %v168
  %232 = vmatprep.subr.bf16.mxu0 %v167
  %233 = vmatpush1.bf16.msra.mxu0 %v166
  %234 = vmatprep.subr.bf16.mxu0 %v165
  %235 = vmatpush1.bf16.msra.mxu0 %v164
  %236 = vmatprep.subr.bf16.mxu0 %v163
  %237 = vmatpush1.bf16.msra.mxu0 %v162
  %238 = vmatprep.subr.bf16.mxu0 %v161
  %239 = vmatpush1.bf16.msra.mxu0 %v160
  %240 = vmatprep.subr.bf16.mxu0 %v191
  %241 = vmatpush2.bf16.msra.mxu0 %v190
  %242 = vmatprep.subr.bf16.mxu0 %v189
  %243 = vmatpush2.bf16.msra.mxu0 %v188
  %244 = vmatprep.subr.bf16.mxu0 %v187
  %245 = vmatpush2.bf16.msra.mxu0 %v186
  %246 = vmatprep.subr.bf16.mxu0 %v185
  %247 = vmatpush2.bf16.msra.mxu0 %v184
  %248 = vmatprep.subr.bf16.mxu0 %v183
  %249 = vmatpush2.bf16.msra.mxu0 %v182
  %250 = vmatprep.subr.bf16.mxu0 %v181
  %251 = vmatpush2.bf16.msra.mxu0 %v180
  %252 = vmatprep.subr.bf16.mxu0 %v179
  %253 = vmatpush2.bf16.msra.mxu0 %v178
  %254 = vmatprep.subr.bf16.mxu0 %v177
  %255 = vmatpush2.bf16.msra.mxu0 %v176
  %256 = vmatprep.mubr.bf16.mxu0 %v19
  %257 = vmatmul.mubr.bf16.gmra.mxu0 %v18
  %v258 = vpop.f32.mrf.mxu0
  %v259 = vadd.f32 %v57, %v258
  %v260 = vpop.f32.mrf.mxu0
  %v261 = vadd.f32 %v61, %v260
  %v262 = vpop.f32.mrf.mxu0
  %v263 = vadd.f32 %v57, %v262
  %v264 = vpop.f32.mrf.mxu0
  %v265 = vadd.f32 %v61, %v264
  %266 = vdwg.mxu0
  %v267 = vmax.f32 %v259, 0.0
  %v268 = vmax.f32 %v261, 0.0
  %v269 = vmax.f32 %v263, 0.0
  %v270 = vmax.f32 %v265, 0.0
  %271 = vst [vmem:[%s3] sm:$0xff] %v267
  %272 = vst [vmem:[%s3 + $0x8] sm:$0xff] %v268
  %273 = vst [vmem:[%s3 + $0x10] sm:$0xff] %v269
  %274 = vst [vmem:[%s3 + $0x18] sm:$0xff] %v270
  // Predicated region
  $region14: #{extract_rela_feature.4} parent=0 // pred_check
    _
  $region15: #{extract_rela_feature.4} parent=0 // pred_check_branch
    %276 = sbr.rel (0) target = $region17
  $region16: #{extract_rela_feature.4} parent=0 // pred_region
    _
  $region17: #{extract_rela_feature.4} parent=0 // pred_fallthru
    _
  // Predicated region
  $region18: #{extract_rela_feature.4} parent=0 // pred_check
    _
  $region19: #{extract_rela_feature.4} parent=0 // pred_check_branch
    %278 = sbr.rel (0) target = $region21
  $region20: #{extract_rela_feature.4} parent=0 // pred_region
    _
  $region21: #{extract_rela_feature.4} parent=0 // pred_fallthru
    _

// kernel: extract_rela_feature.5
$region0: #{extract_rela_feature.5}
  #allocation0 [shape = 'u32[]', space=smem, size = 0x4, offset = 0x4, fixed_abs, tag = 'smem constant byte address 0x4 - core index']
  #allocation1 [shape = 'u32[144,128]{1,0:T(1,128)}', space=vmem, size = 0x12000, scoped, tag = 'internal scratch']
  %s0 = inlined_call_operand.vmem [shape: f32[8,5], index: 0, kind: input, shape index: {}]
  %s1 = inlined_call_operand.vmem [shape: f32[8,5], index: 1, kind: input, shape index: {}]
  %s2 = inlined_call_operand.vmem [shape: bf16[8,128], index: 2, kind: input, shape index: {}]
  %s3 = inlined_call_operand.vmem [shape: f32[1,128], index: 3, kind: input, shape index: {}]
  %s4 = inlined_call_operand.hbm [shape: f32[8,128], index: 4, kind: output, shape index: {}]
  %s5 = sld [smem:[#allocation0]]
  $region26: #{extract_rela_feature.5} parent=0
    _
  %s7 = ssub.s32 1, %s5
  %s8 = scalar_select 0, %s7, %s5
  $region1: #{extract_rela_feature.5} parent=0
    #allocation2 [shape = 'u8[4096]{0}', space=vmem, size = 0x1000, scoped, tag = 'output window, operand 0, single buffered']
    #allocation3 [shape = 's32[1]{0}', space=sflag, size = 0x4, scoped, tag = 'scoped memory for extract_rela_feature.5']
    %9 = vsyncpa [#allocation3], 0
    // Predicated region
    $region2: #{extract_rela_feature.5} parent=1 // pred_check
      _
    $region3: #{extract_rela_feature.5} parent=1 // pred_check_branch
      %11 = sbr.rel (0) target = $region5
    $region4: #{extract_rela_feature.5} parent=1 // pred_region
      _
    $region5: #{extract_rela_feature.5} parent=1 // pred_fallthru
      _
    // Predicated region
    $region6: #{extract_rela_feature.5} parent=1 // pred_check
      _
    $region7: #{extract_rela_feature.5} parent=1 // pred_check_branch
      %13 = sbr.rel (0) target = $region9
    $region8: #{extract_rela_feature.5} parent=1 // pred_region
      _
    $region9: #{extract_rela_feature.5} parent=1 // pred_fallthru
      _
    // Predicated region
    $region10: #{extract_rela_feature.5} parent=1 // pred_check
      _
    $region11: #{extract_rela_feature.5} parent=1 // pred_check_branch
      %15 = sbr.rel (0) target = $region13
    $region12: #{extract_rela_feature.5} parent=1 // pred_region
      _
    $region13: #{extract_rela_feature.5} parent=1 // pred_fallthru
      _
    // Predicated region
    $region14: #{extract_rela_feature.5} parent=1 // pred_check
      _
    $region15: #{extract_rela_feature.5} parent=1 // pred_check_branch
      %17 = sbr.rel (0) target = $region17
    $region16: #{extract_rela_feature.5} parent=1 // pred_region
      _
    $region17: #{extract_rela_feature.5} parent=1 // pred_fallthru
      _
    %v19 = vld [vmem:[%s0] sm:$0xff]
    %v20 = vld [vmem:[%s1] sm:$0xff]
    %v21 = vmin.f32 %v19, %v20
    %v22 = vmax.f32 %v19, %v20
    %24 = vrot.lane.b32.xlu0 %v21, 2
    %v25 = vpop.permute.xlu0 %24
    %v27 = vsub.f32 %v22, %v25
    %v28 = vrcp.pop %v27
    %v29 = vsub.f32 %v19, %v21
    %31 = vrot.lane.b32.xlu0 %v28, 126
    %v32 = vpop.permute.xlu0 %31
    %v34 = vmul.f32 %v29, %v32
    %v35 = vsub.f32 %v19, %v22
    %v36 = vmul.f32 %v35, %v28
    %v37 = vsub.f32 %v20, %v21
    %v38 = vmul.f32 %v37, %v32
    %v39 = vsub.f32 %v20, %v22
    %v40 = vmul.f32 %v39, %v28
    %42 = vrot.lane.b32.xlu0 %v34, 127
    %v43 = vpop.permute.xlu0 %42
    %46 = vrot.lane.b32.xlu0 %v36, 127
    %v47 = vpop.permute.xlu0 %46
    %50 = vrot.lane.b32.xlu0 %v38, 3
    %v51 = vpop.permute.xlu0 %50
    %54 = vrot.lane.b32.xlu0 %v40, 3
    %v55 = vpop.permute.xlu0 %54
    %vm57 = vcmask 15360
    %v58 = vsel %vm57, %v43, %v47
    %vm59 = vcmask 23552
    %v60 = vsel %vm59, %v58, %v47
    %vm61 = vcmask 31744
    %v62 = vsel %vm61, %v60, %v51
    %vm63 = vcmask 39936
    %v64 = vsel %vm63, %v62, %v51
    %vm65 = vcmask 48128
    %v66 = vsel %vm65, %v64, %v55
    %vm67 = vcmask 56320
    %v68 = vsel %vm67, %v66, %v55
    %v69 = vpack.c.bf16 %v68, %v68
    %v70 = vld [vmem:[%s2] sm:$0xf]
    %v71 = vld [vmem:[%s3] sm:$0x1]
    %v73 = vlaneseq
    %v74 = vshrl.u32 %v73, 7
    %v75 = vsub.s32 0, %v74
    %v76 = vrot.slane %v71, %v75
    %vm78 = vcmask 64512
    %v80 = vsel %vm78, %v69, 0
    %vm82 = vcmask 1043456
    %v84 = vsel %vm82, %v70, 0
    %86 = vmatprep.subr.bf16.mxu0 0
    %87 = vmatpush1.bf16.msra.mxu0 0
    %88 = vmatprep.subr.bf16.mxu0 0
    %89 = vmatpush1.bf16.msra.mxu0 0
    %90 = vmatprep.subr.bf16.mxu0 0
    %91 = vmatpush1.bf16.msra.mxu0 0
    %92 = vmatprep.subr.bf16.mxu0 0
    %93 = vmatpush1.bf16.msra.mxu0 0
    %94 = vmatprep.subr.bf16.mxu0 0
    %95 = vmatpush1.bf16.msra.mxu0 0
    %96 = vmatprep.subr.bf16.mxu0 0
    %97 = vmatpush1.bf16.msra.mxu0 0
    %98 = vmatprep.subr.bf16.mxu0 0
    %99 = vmatpush1.bf16.msra.mxu0 0
    %100 = vmatprep.subr.bf16.mxu0 0
    %101 = vmatpush1.bf16.msra.mxu0 %v84
    %102 = vmatprep.subr.bf16.mxu0 0
    %103 = vmatpush2.bf16.msra.mxu0 0
    %104 = vmatprep.subr.bf16.mxu0 0
    %105 = vmatpush2.bf16.msra.mxu0 0
    %106 = vmatprep.subr.bf16.mxu0 0
    %107 = vmatpush2.bf16.msra.mxu0 0
    %108 = vmatprep.subr.bf16.mxu0 0
    %109 = vmatpush2.bf16.msra.mxu0 0
    %110 = vmatprep.subr.bf16.mxu0 0
    %111 = vmatpush2.bf16.msra.mxu0 0
    %112 = vmatprep.subr.bf16.mxu0 0
    %113 = vmatpush2.bf16.msra.mxu0 0
    %114 = vmatprep.subr.bf16.mxu0 0
    %115 = vmatpush2.bf16.msra.mxu0 0
    %116 = vmatprep.subr.bf16.mxu0 0
    %117 = vmatpush2.bf16.msra.mxu0 0
    %118 = vmatprep.mubr.bf16.mxu0 0
    %119 = vmatmul.mubr.bf16.gmra.mxu0 %v80
    %v120 = vpop.f32.mrf.mxu0
    %v121 = vadd.f32 %v76, %v120
    %v122 = vpop.f32.mrf.mxu0
    %v123 = vpop.f32.mrf.mxu0
    %v124 = vpop.f32.mrf.mxu0
    %125 = vdwg.mxu0
    %v126 = vmax.f32 %v121, 0.0
    %127 = vst [vmem:[#allocation2] sm:$0xff] %v126
    // Predicated region
    $region18: #{extract_rela_feature.5} parent=1 // pred_check
      _
    $region19: #{extract_rela_feature.5} parent=1 // pred_check_branch
      %129 = sbr.rel (0) target = $region21
    $region20: #{extract_rela_feature.5} parent=1 // pred_region
      %s131 = ssub.s32 128, 128
      %132 = vsyncadd [#allocation3], %s131
      %s134 = sshll.u32 [#allocation2], 4
      %s135 = int_to_ptr.vmem [resolvable:$true] %s134
      %137 = dma.vmem_to_hbm [thread:$0]  %s135, 128, %s4, [#allocation3]
    $region21: #{extract_rela_feature.5} parent=1 // pred_fallthru
      _
    // Predicated region
    $region22: #{extract_rela_feature.5} parent=1 // pred_check
      _
    $region23: #{extract_rela_feature.5} parent=1 // pred_check_branch
      %139 = sbr.rel (0) target = $region25
    $region24: #{extract_rela_feature.5} parent=1 // pred_region
      %140 = dma.done [#allocation3], 128
    $region25: #{extract_rela_feature.5} parent=1 // pred_fallthru
      _
    %141 = vsyncpa [#allocation3], 1

// kernel: extract_rela_feature.7
$region0: #{extract_rela_feature.7}
  #allocation0 [shape = 'u32[]', space=smem, size = 0x4, offset = 0x4, fixed_abs, tag = 'smem constant byte address 0x4 - core index']
  #allocation1 [shape = 'u32[144,128]{1,0:T(1,128)}', space=vmem, size = 0x12000, scoped, tag = 'internal scratch']
  %s0 = inlined_call_operand.vmem [shape: bf16[8,70], index: 0, kind: input, shape index: {}]
  %s1 = inlined_call_operand.vmem [shape: bf16[70,128], index: 1, kind: input, shape index: {}]
  %s2 = inlined_call_operand.vmem [shape: f32[1,128], index: 2, kind: input, shape index: {}]
  %s3 = inlined_call_operand.hbm [shape: f32[8,128], index: 3, kind: output, shape index: {}]
  %s4 = sld [smem:[#allocation0]]
  $region22: #{extract_rela_feature.7} parent=0
    _
  %s6 = ssub.s32 1, %s4
  %s7 = scalar_select 0, %s6, %s4
  $region1: #{extract_rela_feature.7} parent=0
    #allocation2 [shape = 'u8[4096]{0}', space=vmem, size = 0x1000, scoped, tag = 'output window, operand 0, single buffered']
    #allocation3 [shape = 's32[1]{0}', space=sflag, size = 0x4, scoped, tag = 'scoped memory for extract_rela_feature.7']
    %8 = vsyncpa [#allocation3], 0
    // Predicated region
    $region2: #{extract_rela_feature.7} parent=1 // pred_check
      _
    $region3: #{extract_rela_feature.7} parent=1 // pred_check_branch
      %10 = sbr.rel (0) target = $region5
    $region4: #{extract_rela_feature.7} parent=1 // pred_region
      _
    $region5: #{extract_rela_feature.7} parent=1 // pred_fallthru
      _
    // Predicated region
    $region6: #{extract_rela_feature.7} parent=1 // pred_check
      _
    $region7: #{extract_rela_feature.7} parent=1 // pred_check_branch
      %12 = sbr.rel (0) target = $region9
    $region8: #{extract_rela_feature.7} parent=1 // pred_region
      _
    $region9: #{extract_rela_feature.7} parent=1 // pred_fallthru
      _
    // Predicated region
    $region10: #{extract_rela_feature.7} parent=1 // pred_check
      _
    $region11: #{extract_rela_feature.7} parent=1 // pred_check_branch
      %14 = sbr.rel (0) target = $region13
    $region12: #{extract_rela_feature.7} parent=1 // pred_region
      _
    $region13: #{extract_rela_feature.7} parent=1 // pred_fallthru
      _
    %v16 = vld [vmem:[%s0] sm:$0xf]
    %v17 = vld [vmem:[%s1] sm:$0xf]
    %v18 = vld [vmem:[%s1 + $0x4] sm:$0xf]
    %v19 = vld [vmem:[%s1 + $0x8] sm:$0xf]
    %v20 = vld [vmem:[%s1 + $0xc] sm:$0xf]
    %v21 = vld [vmem:[%s1 + $0x10] sm:$0xf]
    %v22 = vld [vmem:[%s1 + $0x14] sm:$0xf]
    %v23 = vld [vmem:[%s1 + $0x18] sm:$0xf]
    %v24 = vld [vmem:[%s1 + $0x1c] sm:$0xf]
    %v25 = vld [vmem:[%s1 + $0x20] sm:$0x7]
    %v26 = vld [vmem:[%s2] sm:$0x1]
    %v28 = vlaneseq
    %v29 = vshrl.u32 %v28, 7
    %v30 = vsub.s32 0, %v29
    %v31 = vrot.slane %v26, %v30
    %v42 = vunpack.c.l.b16 %v17
    %v43 = vunpack.c.l.b16 %v18
    %v44 = vunpack.c.l.b16 %v19
    %v45 = vunpack.c.l.b16 %v20
    %v46 = vunpack.c.l.b16 %v21
    %v47 = vunpack.c.l.b16 %v22
    %v48 = vunpack.c.l.b16 %v23
    %v49 = vunpack.c.l.b16 %v24
    %v50 = vunpack.c.l.b16 %v25
    %v51 = vpack.c.b16 %v43, %v42
    %v52 = vpack.c.b16 %v45, %v44
    %v53 = vpack.c.b16 %v47, %v46
    %v54 = vpack.c.b16 %v49, %v48
    %v55 = vpack.c.b16 %v50, %v50
    %vm60 = vcmask 572416
    %v62 = vsel %vm60, %v16, 0
    %vm64 = vcmask 1042432
    %v66 = vsel %vm64, %v55, 0
    %68 = vmatprep.subr.bf16.mxu0 0
    %69 = vmatpush1.bf16.msra.mxu0 0
    %70 = vmatprep.subr.bf16.mxu0 0
    %71 = vmatpush1.bf16.msra.mxu0 0
    %72 = vmatprep.subr.bf16.mxu0 0
    %73 = vmatpush1.bf16.msra.mxu0 0
    %74 = vmatprep.subr.bf16.mxu0 0
    %75 = vmatpush1.bf16.msra.mxu0 %v66
    %76 = vmatprep.subr.bf16.mxu0 0
    %77 = vmatpush1.bf16.msra.mxu0 %v54
    %78 = vmatprep.subr.bf16.mxu0 0
    %79 = vmatpush1.bf16.msra.mxu0 %v53
    %80 = vmatprep.subr.bf16.mxu0 0
    %81 = vmatpush1.bf16.msra.mxu0 %v52
    %82 = vmatprep.subr.bf16.mxu0 0
    %83 = vmatpush1.bf16.msra.mxu0 %v51
    %84 = vmatprep.subr.bf16.mxu0 0
    %85 = vmatpush2.bf16.msra.mxu0 0
    %86 = vmatprep.subr.bf16.mxu0 0
    %87 = vmatpush2.bf16.msra.mxu0 0
    %88 = vmatprep.subr.bf16.mxu0 0
    %89 = vmatpush2.bf16.msra.mxu0 0
    %90 = vmatprep.subr.bf16.mxu0 0
    %91 = vmatpush2.bf16.msra.mxu0 0
    %92 = vmatprep.subr.bf16.mxu0 0
    %93 = vmatpush2.bf16.msra.mxu0 0
    %94 = vmatprep.subr.bf16.mxu0 0
    %95 = vmatpush2.bf16.msra.mxu0 0
    %96 = vmatprep.subr.bf16.mxu0 0
    %97 = vmatpush2.bf16.msra.mxu0 0
    %98 = vmatprep.subr.bf16.mxu0 0
    %99 = vmatpush2.bf16.msra.mxu0 0
    %100 = vmatprep.mubr.bf16.mxu0 0
    %101 = vmatmul.mubr.bf16.gmra.mxu0 %v62
    %v102 = vpop.f32.mrf.mxu0
    %v103 = vadd.f32 %v31, %v102
    %v104 = vpop.f32.mrf.mxu0
    %v105 = vpop.f32.mrf.mxu0
    %v106 = vpop.f32.mrf.mxu0
    %107 = vdwg.mxu0
    %v108 = vmax.f32 %v103, 0.0
    %109 = vst [vmem:[#allocation2] sm:$0xff] %v108
    // Predicated region
    $region14: #{extract_rela_feature.7} parent=1 // pred_check
      _
    $region15: #{extract_rela_feature.7} parent=1 // pred_check_branch
      %111 = sbr.rel (0) target = $region17
    $region16: #{extract_rela_feature.7} parent=1 // pred_region
      %s113 = ssub.s32 128, 128
      %114 = vsyncadd [#allocation3], %s113
      %s116 = sshll.u32 [#allocation2], 4
      %s117 = int_to_ptr.vmem [resolvable:$true] %s116
      %119 = dma.vmem_to_hbm [thread:$0]  %s117, 128, %s3, [#allocation3]
    $region17: #{extract_rela_feature.7} parent=1 // pred_fallthru
      _
    // Predicated region
    $region18: #{extract_rela_feature.7} parent=1 // pred_check
      _
    $region19: #{extract_rela_feature.7} parent=1 // pred_check_branch
      %121 = sbr.rel (0) target = $region21
    $region20: #{extract_rela_feature.7} parent=1 // pred_region
      %122 = dma.done [#allocation3], 128
    $region21: #{extract_rela_feature.7} parent=1 // pred_fallthru
      _
    %123 = vsyncpa [#allocation3], 1

</llo_original>
